<compile_context>
chip_gen: v7x
topology: tpu7x:2x2x1
jax: 0.10.0
libtpu: 0.0.40
codegen_flags: <defaults>
</compile_context>

<pallas_src>
import jax
import jax.numpy as jnp
from jax import lax
from jax.experimental import pallas as pl
from jax.experimental.pallas import tpu as pltpu

EPS = 1e-5  # PyTorch BatchNorm default eps


def _round_up(x, m):
    return (x + m - 1) // m * m


# ----------------------------------------------------------------------------
# Pallas kernels
# ----------------------------------------------------------------------------
def _conv_pool_kernel(pt_ref, w_ref, shift_ref, o_ref):
    """Fused Conv2d(k=3,s=2,p=1) + BatchNorm(eval; scale folded into w) + ReLU
    + MaxPool2d(2), computed transposed so the big spatial dim is lane-dense.

    pt_ref:    (4, Kp, Mb)  im2col patches, leading axis = 2x2 pool position
    w_ref:     (Cout, Kp)   BN-scale-folded conv weights
    shift_ref: (Cout, 1)    BN shift (conv bias folded in)
    o_ref:     (Cout, Mb)   pooled output block
    """
    w = w_ref[...]
    shift = shift_ref[...]

    def pool_branch(p):
        acc = jnp.dot(w, pt_ref[p], preferred_element_type=jnp.float32)
        return jnp.maximum(acc + shift, 0.0)   # BN shift + ReLU (pre-pool, exact)

    y = jnp.maximum(jnp.maximum(pool_branch(0), pool_branch(1)),
                    jnp.maximum(pool_branch(2), pool_branch(3)))
    o_ref[...] = y.astype(o_ref.dtype)


def _dense_head_kernel(x_ref, w1_ref, s1_ref, w2_ref, s2_ref, w3_ref, s3_ref,
                       w4_ref, s4_ref, w5_ref, b5_ref, o_ref):
    """Whole dense head in one kernel: 4x (Linear+BN+ReLU) + final Linear.
    Activations (2 x <=32) stay in vregs; all weights together are < 20 KB."""
    def lin_relu(h, w_ref, s_ref):
        return jnp.maximum(
            jnp.dot(h, w_ref[...], preferred_element_type=jnp.float32)
            + s_ref[...], 0.0)

    h = x_ref[...]
    h = lin_relu(h, w1_ref, s1_ref)
    h = lin_relu(h, w2_ref, s2_ref)
    h = lin_relu(h, w3_ref, s3_ref)
    # Dropout(p=0.2): identity in eval mode
    h = lin_relu(h, w4_ref, s4_ref)
    # Dropout(p=0.2): identity in eval mode
    out = jnp.dot(h, w5_ref[...], preferred_element_type=jnp.float32) + b5_ref[...]
    o_ref[...] = out.astype(o_ref.dtype)


# ----------------------------------------------------------------------------
# pallas_call wrappers
# ----------------------------------------------------------------------------
def conv_pool_stage(pt, w_mat, shift):
    """pt: (4, Kp, Mq); w_mat: (Cout, Kp); shift: (Cout, 1) -> (Cout, Mq)."""
    _, kp, mq = pt.shape
    cout = w_mat.shape[0]
    # 2 parallel lane blocks when there is enough work (keeps both v7x TCs
    # busy); otherwise a single grid step (v5e/v6e-friendly, no step overhead).
    nb = 2 if (mq >= 512 and mq % 256 == 0) else 1
    mb = mq // nb
    return pl.pallas_call(
        _conv_pool_kernel,
        out_shape=jax.ShapeDtypeStruct((cout, mq), jnp.float32),
        grid=(nb,),
        in_specs=[
            pl.BlockSpec((4, kp, mb), lambda i: (0, 0, i)),
            pl.BlockSpec((cout, kp), lambda i: (0, 0)),
            pl.BlockSpec((cout, 1), lambda i: (0, 0)),
        ],
        out_specs=pl.BlockSpec((cout, mb), lambda i: (0, i)),
        compiler_params=pltpu.CompilerParams(dimension_semantics=("parallel",)),
    )(pt, w_mat, shift)


def dense_head(x, dense_params):
    (w1, s1), (w2, s2), (w3, s3), (w4, s4), (w5, b5) = dense_params
    n = x.shape[0]
    n_classes = w5.shape[1]
    vspec = pl.BlockSpec(memory_space=pltpu.MemorySpace.VMEM)
    return pl.pallas_call(
        _dense_head_kernel,
        out_shape=jax.ShapeDtypeStruct((n, n_classes), jnp.float32),
        in_specs=[vspec] * 11,
        out_specs=vspec,
    )(x, w1, s1, w2, s2, w3, s3, w4, s4, w5, b5)


# ----------------------------------------------------------------------------
# XLA-side glue: pool-grouped transposed im2col (pure data movement)
# ----------------------------------------------------------------------------
def pool_grouped_patches(x_cnhw, k=3, stride=2, pad=1):
    """x: (C, N, H, W) -> (4, Kpad, N*Ho2*Wo2): im2col patches (transposed so
    spatial sits in lanes), grouped by the four 2x2-maxpool positions of the
    conv output; K = k*k*C zero-padded to a multiple of 8."""
    C, N, H, W = x_cnhw.shape
    Ho = (H + 2 * pad - k) // stride + 1
    Wo = (W + 2 * pad - k) // stride + 1
    Ho2, Wo2 = Ho // 2, Wo // 2
    xp = jnp.pad(x_cnhw, ((0, 0), (0, 0), (pad, pad), (pad, pad)))
    taps = []
    for dh in range(k):
        for dw in range(k):
            taps.append(xp[:, :, dh:dh + stride * (Ho - 1) + 1:stride,
                              dw:dw + stride * (Wo - 1) + 1:stride])
    t = jnp.stack(taps, axis=0)                      # (k*k, C, N, Ho, Wo)
    t = t[:, :, :, :2 * Ho2, :2 * Wo2]               # defensive (Ho/Wo even here)
    t = t.reshape(k * k, C, N, Ho2, 2, Wo2, 2)       # (kk, c, n, ho2, a, wo2, b)
    t = t.transpose(4, 6, 0, 1, 2, 3, 5)             # (a, b, kk, c, n, ho2, wo2)
    kdim = k * k * C
    t = t.reshape(4, kdim, N * Ho2 * Wo2)
    kpad = _round_up(kdim, 8)
    if kpad != kdim:
        t = jnp.pad(t, ((0, 0), (0, kpad - kdim), (0, 0)))
    return t, (N, Ho2, Wo2)


# ----------------------------------------------------------------------------
# Parameter construction + BN folding (done once, outside the forward pass)
# ----------------------------------------------------------------------------
def _conv_params(key, cin, cout, k=3):
    kw, kb = jax.random.split(key)
    w = jax.random.normal(kw, (k, k, cin, cout), jnp.float32) * (0.5 / (k * k * cin) ** 0.5)
    b = 0.01 * jax.random.normal(kb, (cout,), jnp.float32)
    return w, b


def _linear_params(key, cin, cout):
    kw, kb = jax.random.split(key)
    w = jax.random.normal(kw, (cin, cout), jnp.float32) * (0.5 / cin ** 0.5)
    b = 0.01 * jax.random.normal(kb, (cout,), jnp.float32)
    return w, b


def _bn_params(key, c):
    k1, k2, k3, k4 = jax.random.split(key, 4)
    gamma = 1.0 + 0.1 * jax.random.normal(k1, (c,), jnp.float32)
    beta = 0.1 * jax.random.normal(k2, (c,), jnp.float32)
    mean = 0.1 * jax.random.normal(k3, (c,), jnp.float32)
    var = 1.0 + 0.05 * jax.random.uniform(k4, (c,), jnp.float32)
    return gamma, beta, mean, var


def init_params(key, in_channels=3, filters=4, units1=32, units2=32,
                flattened_size=12, n_classes=5):
    assert units1 == units2, "reference dense stack only type-checks when units1 == units2"
    keys = jax.random.split(key, 16)
    p = {}
    p["c1"] = _conv_params(keys[0], in_channels, filters) + _bn_params(keys[1], filters)
    p["c2"] = _conv_params(keys[2], filters, filters * 2) + _bn_params(keys[3], filters * 2)
    p["c3"] = _conv_params(keys[4], filters * 2, filters * 3) + _bn_params(keys[5], filters * 3)
    p["d1"] = _linear_params(keys[6], flattened_size, units1) + _bn_params(keys[7], units1)
    p["d2"] = _linear_params(keys[8], units1, units2) + _bn_params(keys[9], units2)
    p["d3"] = _linear_params(keys[10], units1, units2) + _bn_params(keys[11], units2)
    p["d4"] = _linear_params(keys[12], units2, units2) + _bn_params(keys[13], units2)
    p["d5"] = _linear_params(keys[14], units2, n_classes)
    return p


def _fold_bn(bias, gamma, beta, mean, var):
    inv = gamma * lax.rsqrt(var + EPS)
    return inv, (bias - mean) * inv + beta


def fold_params(params):
    """Fold eval-mode BatchNorm scale into weights (w' = scale * w) and lay the
    weights out in kernel-ready form. Conv weights become (Cout, Kpad)."""
    folded = {}
    for name in ("c1", "c2", "c3"):
        w, b, gamma, beta, mean, var = params[name]
        k, _, cin, cout = w.shape
        scale, shift = _fold_bn(b, gamma, beta, mean, var)
        w_mat = w.reshape(k * k * cin, cout).T * scale[:, None]   # (cout, K)
        kdim = k * k * cin
        kpad = _round_up(kdim, 8)
        w_mat = jnp.pad(w_mat, ((0, 0), (0, kpad - kdim)))
        folded[name] = (w_mat, shift.reshape(cout, 1))
    dense = []
    for name in ("d1", "d2", "d3", "d4"):
        w, b, gamma, beta, mean, var = params[name]
        scale, shift = _fold_bn(b, gamma, beta, mean, var)
        dense.append((w * scale[None, :], shift.reshape(1, -1)))
    w5, b5 = params["d5"]
    dense.append((w5, b5.reshape(1, -1)))
    folded["dense"] = tuple(dense)
    return folded


# ----------------------------------------------------------------------------
# Forward pass (eval-mode semantics), 4 pallas_calls total
# ----------------------------------------------------------------------------
def cnn_forward(folded, x_nchw):
    x = jnp.transpose(x_nchw, (1, 0, 2, 3))          # NCHW -> (C, N, H, W)
    for name in ("c1", "c2", "c3"):
        w_mat, shift = folded[name]
        pt, (n, h2, w2) = pool_grouped_patches(x)
        y = conv_pool_stage(pt, w_mat, shift)        # (Cout, N*h2*w2), lane-dense
        x = y.reshape(y.shape[0], n, h2, w2)         # next stage input (C,N,H,W)
    # final spatial is 1x1 -> flatten to (N, C); matches PyTorch flatten order
    feats = x.reshape(x.shape[0], x.shape[1]).T      # (N, 3*filters)
    return dense_head(feats, folded["dense"])


# ----------------------------------------------------------------------------
# Pure-JAX reference (for correctness check against the Pallas path)
# ----------------------------------------------------------------------------
def _reference_forward(params, x_nchw):
    x = jnp.transpose(x_nchw, (0, 2, 3, 1))          # NHWC
    for name in ("c1", "c2", "c3"):
        w, b, gamma, beta, mean, var = params[name]
        y = lax.conv_general_dilated(
            x, w, window_strides=(2, 2), padding=((1, 1), (1, 1)),
            dimension_numbers=("NHWC", "HWIO", "NHWC"))
        y = y + b
        y = (y - mean) * (gamma / jnp.sqrt(var + EPS)) + beta
        y = jnp.maximum(y, 0.0)
        n, h, ww, c = y.shape
        x = y.reshape(n, h // 2, 2, ww // 2, 2, c).max(axis=(2, 4))
    h = x.reshape(x.shape[0], -1)
    for name in ("d1", "d2", "d3", "d4"):
        w, b, gamma, beta, mean, var = params[name]
        h = h @ w + b
        h = (h - mean) * (gamma / jnp.sqrt(var + EPS)) + beta
        h = jnp.maximum(h, 0.0)
    w5, b5 = params["d5"]
    return h @ w5 + b5


if __name__ == "__main__":
    # batch=2, channels=3, spatial=64 (smallest power-of-two spatial size that
    # survives three stride-2 convs + three 2x2 maxpools). filters=4, units=32.
    key = jax.random.PRNGKey(0)
    kx, kp = jax.random.split(key)

    batch, cin, hw = 2, 3, 64
    filters, units1, units2 = 4, 32, 32
    flattened_size = filters * 3          # 3F channels * 1x1 spatial after trunk

    x = jax.random.normal(kx, (batch, cin, hw, hw), jnp.float32)
    params = init_params(kp, in_channels=cin, filters=filters,
                         units1=units1, units2=units2,
                         flattened_size=flattened_size, n_classes=5)
    folded = fold_params(params)

    fwd = jax.jit(cnn_forward)
    out = jax.block_until_ready(fwd(folded, x))

    assert out.shape == (batch, 5), out.shape
    assert bool(jnp.all(jnp.isfinite(out)))

    ref = _reference_forward(params, x)
    max_err = float(jnp.max(jnp.abs(out - ref)))
    assert jnp.allclose(out, ref, rtol=2e-2, atol=2e-2), max_err

    print("KERNEL_OK")
</pallas_src>

<mosaic_0001>
module attributes {stable_mosaic.version = 11 : i64} {
  func.func @_conv_pool_kernel(%arg0: i32, %arg1: memref<4x32x256xf32, #tpu.memory_space<vmem>>, %arg2: memref<4x32xf32, #tpu.memory_space<vmem>>, %arg3: memref<4x1xf32, #tpu.memory_space<vmem>>, %arg4: memref<4x256xf32, #tpu.memory_space<vmem>>) attributes {dimension_semantics = [#tpu.dimension_semantics<parallel>], iteration_bounds = array<i64: 2>, scalar_prefetch = 0 : i64, scratch_operands = 0 : i64, tpu.core_type = #tpu.core_type<tc>, window_params = [{transform_indices = @transform_0, window_bounds = array<i64: 4, 32, 256>}, {pipeline_mode = #tpu.pipeline_mode<synchronous>, transform_indices = @transform_1, window_bounds = array<i64: 4, 32>}, {pipeline_mode = #tpu.pipeline_mode<synchronous>, transform_indices = @transform_2, window_bounds = array<i64: 4, 1>}, {transform_indices = @transform_3, window_bounds = array<i64: 4, 256>}]} {
    %c0 = arith.constant 0 : index
    %c0_0 = arith.constant 0 : index
    %0 = vector.load %arg2[%c0, %c0_0] : memref<4x32xf32, #tpu.memory_space<vmem>>, vector<4x32xf32>
    %c0_1 = arith.constant 0 : index
    %c0_2 = arith.constant 0 : index
    %1 = vector.load %arg3[%c0_1, %c0_2] : memref<4x1xf32, #tpu.memory_space<vmem>>, vector<4x1xf32>
    %c0_3 = arith.constant 0 : index
    %c0_4 = arith.constant 0 : index
    %c0_5 = arith.constant 0 : index
    %2 = vector.load %arg1[%c0_3, %c0_4, %c0_5] : memref<4x32x256xf32, #tpu.memory_space<vmem>>, vector<1x32x256xf32>
    %3 = vector.shape_cast %2 : vector<1x32x256xf32> to vector<32x256xf32>
    %cst = arith.constant dense<0.000000e+00> : vector<4x256xf32>
    %4 = tpu.matmul %0, %3, %cst {dimension_numbers = #tpu.dot_dimension_numbers<[1], [0], [0], [1], [0, 0, 1, 1], [], []>} : vector<4x32xf32>, vector<32x256xf32>, vector<4x256xf32> -> vector<4x256xf32>
    %5 = vector.broadcast %1 : vector<4x1xf32> to vector<4x256xf32>
    %6 = arith.addf %4, %5 : vector<4x256xf32>
    %cst_6 = arith.constant 0.000000e+00 : f32
    %7 = vector.broadcast %cst_6 : f32 to vector<4x256xf32>
    %8 = arith.maximumf %6, %7 : vector<4x256xf32>
    %c1 = arith.constant 1 : index
    %c0_7 = arith.constant 0 : index
    %c0_8 = arith.constant 0 : index
    %9 = vector.load %arg1[%c1, %c0_7, %c0_8] : memref<4x32x256xf32, #tpu.memory_space<vmem>>, vector<1x32x256xf32>
    %10 = vector.shape_cast %9 : vector<1x32x256xf32> to vector<32x256xf32>
    %cst_9 = arith.constant dense<0.000000e+00> : vector<4x256xf32>
    %11 = tpu.matmul %0, %10, %cst_9 {dimension_numbers = #tpu.dot_dimension_numbers<[1], [0], [0], [1], [0, 0, 1, 1], [], []>} : vector<4x32xf32>, vector<32x256xf32>, vector<4x256xf32> -> vector<4x256xf32>
    %12 = vector.broadcast %1 : vector<4x1xf32> to vector<4x256xf32>
    %13 = arith.addf %11, %12 : vector<4x256xf32>
    %cst_10 = arith.constant 0.000000e+00 : f32
    %14 = vector.broadcast %cst_10 : f32 to vector<4x256xf32>
    %15 = arith.maximumf %13, %14 : vector<4x256xf32>
    %16 = arith.maximumf %8, %15 : vector<4x256xf32>
    %c2 = arith.constant 2 : index
    %c0_11 = arith.constant 0 : index
    %c0_12 = arith.constant 0 : index
    %17 = vector.load %arg1[%c2, %c0_11, %c0_12] : memref<4x32x256xf32, #tpu.memory_space<vmem>>, vector<1x32x256xf32>
    %18 = vector.shape_cast %17 : vector<1x32x256xf32> to vector<32x256xf32>
    %cst_13 = arith.constant dense<0.000000e+00> : vector<4x256xf32>
    %19 = tpu.matmul %0, %18, %cst_13 {dimension_numbers = #tpu.dot_dimension_numbers<[1], [0], [0], [1], [0, 0, 1, 1], [], []>} : vector<4x32xf32>, vector<32x256xf32>, vector<4x256xf32> -> vector<4x256xf32>
    %20 = vector.broadcast %1 : vector<4x1xf32> to vector<4x256xf32>
    %21 = arith.addf %19, %20 : vector<4x256xf32>
    %cst_14 = arith.constant 0.000000e+00 : f32
    %22 = vector.broadcast %cst_14 : f32 to vector<4x256xf32>
    %23 = arith.maximumf %21, %22 : vector<4x256xf32>
    %c3 = arith.constant 3 : index
    %c0_15 = arith.constant 0 : index
    %c0_16 = arith.constant 0 : index
    %24 = vector.load %arg1[%c3, %c0_15, %c0_16] : memref<4x32x256xf32, #tpu.memory_space<vmem>>, vector<1x32x256xf32>
    %25 = vector.shape_cast %24 : vector<1x32x256xf32> to vector<32x256xf32>
    %cst_17 = arith.constant dense<0.000000e+00> : vector<4x256xf32>
    %26 = tpu.matmul %0, %25, %cst_17 {dimension_numbers = #tpu.dot_dimension_numbers<[1], [0], [0], [1], [0, 0, 1, 1], [], []>} : vector<4x32xf32>, vector<32x256xf32>, vector<4x256xf32> -> vector<4x256xf32>
    %27 = vector.broadcast %1 : vector<4x1xf32> to vector<4x256xf32>
    %28 = arith.addf %26, %27 : vector<4x256xf32>
    %cst_18 = arith.constant 0.000000e+00 : f32
    %29 = vector.broadcast %cst_18 : f32 to vector<4x256xf32>
    %30 = arith.maximumf %28, %29 : vector<4x256xf32>
    %31 = arith.maximumf %23, %30 : vector<4x256xf32>
    %32 = arith.maximumf %16, %31 : vector<4x256xf32>
    %c0_19 = arith.constant 0 : index
    %c0_20 = arith.constant 0 : index
    %33 = vector.load %arg4[%c0_19, %c0_20] : memref<4x256xf32, #tpu.memory_space<vmem>>, vector<4x256xf32>
    tpu.vector_store %arg4[%c0_19, %c0_20], %32 {strides = array<i32>} : memref<4x256xf32, #tpu.memory_space<vmem>>, vector<4x256xf32>,
    return
  }
  func.func @transform_0(%arg0: i32) -> (i32, i32, i32) {
    %c0_i32 = arith.constant 0 : i32
    %c0_i32_0 = arith.constant 0 : i32
    %c0_i32_1 = arith.constant 0 : i32
    return %c0_i32, %c0_i32_0, %arg0 : i32, i32, i32
  }
  func.func @transform_1(%arg0: i32) -> (i32, i32) {
    %c0_i32 = arith.constant 0 : i32
    %c0_i32_0 = arith.constant 0 : i32
    %c0_i32_1 = arith.constant 0 : i32
    return %c0_i32, %c0_i32_0 : i32, i32
  }
  func.func @transform_2(%arg0: i32) -> (i32, i32) {
    %c0_i32 = arith.constant 0 : i32
    %c0_i32_0 = arith.constant 0 : i32
    %c0_i32_1 = arith.constant 0 : i32
    return %c0_i32, %c0_i32_0 : i32, i32
  }
  func.func @transform_3(%arg0: i32) -> (i32, i32) {
    %c0_i32 = arith.constant 0 : i32
    %c0_i32_0 = arith.constant 0 : i32
    return %c0_i32, %arg0 : i32, i32
  }
}

module attributes {stable_mosaic.version = 11 : i64} {
  func.func @_conv_pool_kernel(%arg0: i32, %arg1: memref<4x40x32xf32, #tpu.memory_space<vmem>>, %arg2: memref<8x40xf32, #tpu.memory_space<vmem>>, %arg3: memref<8x1xf32, #tpu.memory_space<vmem>>, %arg4: memref<8x32xf32, #tpu.memory_space<vmem>>) attributes {dimension_semantics = [#tpu.dimension_semantics<parallel>], iteration_bounds = array<i64: 1>, scalar_prefetch = 0 : i64, scratch_operands = 0 : i64, tpu.core_type = #tpu.core_type<tc>, window_params = [{transform_indices = @transform_0, window_bounds = array<i64: 4, 40, 32>}, {pipeline_mode = #tpu.pipeline_mode<synchronous>, transform_indices = @transform_1, window_bounds = array<i64: 8, 40>}, {pipeline_mode = #tpu.pipeline_mode<synchronous>, transform_indices = @transform_2, window_bounds = array<i64: 8, 1>}, {transform_indices = @transform_3, window_bounds = array<i64: 8, 32>}]} {
    %c0 = arith.constant 0 : index
    %c0_0 = arith.constant 0 : index
    %0 = vector.load %arg2[%c0, %c0_0] : memref<8x40xf32, #tpu.memory_space<vmem>>, vector<8x40xf32>
    %c0_1 = arith.constant 0 : index
    %c0_2 = arith.constant 0 : index
    %1 = vector.load %arg3[%c0_1, %c0_2] : memref<8x1xf32, #tpu.memory_space<vmem>>, vector<8x1xf32>
    %c0_3 = arith.constant 0 : index
    %c0_4 = arith.constant 0 : index
    %c0_5 = arith.constant 0 : index
    %2 = vector.load %arg1[%c0_3, %c0_4, %c0_5] : memref<4x40x32xf32, #tpu.memory_space<vmem>>, vector<1x40x32xf32>
    %3 = vector.shape_cast %2 : vector<1x40x32xf32> to vector<40x32xf32>
    %cst = arith.constant dense<0.000000e+00> : vector<8x32xf32>
    %4 = tpu.matmul %0, %3, %cst {dimension_numbers = #tpu.dot_dimension_numbers<[1], [0], [0], [1], [0, 0, 1, 1], [], []>} : vector<8x40xf32>, vector<40x32xf32>, vector<8x32xf32> -> vector<8x32xf32>
    %5 = vector.broadcast %1 : vector<8x1xf32> to vector<8x32xf32>
    %6 = arith.addf %4, %5 : vector<8x32xf32>
    %cst_6 = arith.constant 0.000000e+00 : f32
    %7 = vector.broadcast %cst_6 : f32 to vector<8x32xf32>
    %8 = arith.maximumf %6, %7 : vector<8x32xf32>
    %c1 = arith.constant 1 : index
    %c0_7 = arith.constant 0 : index
    %c0_8 = arith.constant 0 : index
    %9 = vector.load %arg1[%c1, %c0_7, %c0_8] : memref<4x40x32xf32, #tpu.memory_space<vmem>>, vector<1x40x32xf32>
    %10 = vector.shape_cast %9 : vector<1x40x32xf32> to vector<40x32xf32>
    %cst_9 = arith.constant dense<0.000000e+00> : vector<8x32xf32>
    %11 = tpu.matmul %0, %10, %cst_9 {dimension_numbers = #tpu.dot_dimension_numbers<[1], [0], [0], [1], [0, 0, 1, 1], [], []>} : vector<8x40xf32>, vector<40x32xf32>, vector<8x32xf32> -> vector<8x32xf32>
    %12 = vector.broadcast %1 : vector<8x1xf32> to vector<8x32xf32>
    %13 = arith.addf %11, %12 : vector<8x32xf32>
    %cst_10 = arith.constant 0.000000e+00 : f32
    %14 = vector.broadcast %cst_10 : f32 to vector<8x32xf32>
    %15 = arith.maximumf %13, %14 : vector<8x32xf32>
    %16 = arith.maximumf %8, %15 : vector<8x32xf32>
    %c2 = arith.constant 2 : index
    %c0_11 = arith.constant 0 : index
    %c0_12 = arith.constant 0 : index
    %17 = vector.load %arg1[%c2, %c0_11, %c0_12] : memref<4x40x32xf32, #tpu.memory_space<vmem>>, vector<1x40x32xf32>
    %18 = vector.shape_cast %17 : vector<1x40x32xf32> to vector<40x32xf32>
    %cst_13 = arith.constant dense<0.000000e+00> : vector<8x32xf32>
    %19 = tpu.matmul %0, %18, %cst_13 {dimension_numbers = #tpu.dot_dimension_numbers<[1], [0], [0], [1], [0, 0, 1, 1], [], []>} : vector<8x40xf32>, vector<40x32xf32>, vector<8x32xf32> -> vector<8x32xf32>
    %20 = vector.broadcast %1 : vector<8x1xf32> to vector<8x32xf32>
    %21 = arith.addf %19, %20 : vector<8x32xf32>
    %cst_14 = arith.constant 0.000000e+00 : f32
    %22 = vector.broadcast %cst_14 : f32 to vector<8x32xf32>
    %23 = arith.maximumf %21, %22 : vector<8x32xf32>
    %c3 = arith.constant 3 : index
    %c0_15 = arith.constant 0 : index
    %c0_16 = arith.constant 0 : index
    %24 = vector.load %arg1[%c3, %c0_15, %c0_16] : memref<4x40x32xf32, #tpu.memory_space<vmem>>, vector<1x40x32xf32>
    %25 = vector.shape_cast %24 : vector<1x40x32xf32> to vector<40x32xf32>
    %cst_17 = arith.constant dense<0.000000e+00> : vector<8x32xf32>
    %26 = tpu.matmul %0, %25, %cst_17 {dimension_numbers = #tpu.dot_dimension_numbers<[1], [0], [0], [1], [0, 0, 1, 1], [], []>} : vector<8x40xf32>, vector<40x32xf32>, vector<8x32xf32> -> vector<8x32xf32>
    %27 = vector.broadcast %1 : vector<8x1xf32> to vector<8x32xf32>
    %28 = arith.addf %26, %27 : vector<8x32xf32>
    %cst_18 = arith.constant 0.000000e+00 : f32
    %29 = vector.broadcast %cst_18 : f32 to vector<8x32xf32>
    %30 = arith.maximumf %28, %29 : vector<8x32xf32>
    %31 = arith.maximumf %23, %30 : vector<8x32xf32>
    %32 = arith.maximumf %16, %31 : vector<8x32xf32>
    %c0_19 = arith.constant 0 : index
    %c0_20 = arith.constant 0 : index
    %33 = vector.load %arg4[%c0_19, %c0_20] : memref<8x32xf32, #tpu.memory_space<vmem>>, vector<8x32xf32>
    tpu.vector_store %arg4[%c0_19, %c0_20], %32 {strides = array<i32>} : memref<8x32xf32, #tpu.memory_space<vmem>>, vector<8x32xf32>,
    return
  }
  func.func @transform_0(%arg0: i32) -> (i32, i32, i32) {
    %c0_i32 = arith.constant 0 : i32
    %c0_i32_0 = arith.constant 0 : i32
    %c0_i32_1 = arith.constant 0 : i32
    return %c0_i32, %c0_i32_0, %arg0 : i32, i32, i32
  }
  func.func @transform_1(%arg0: i32) -> (i32, i32) {
    %c0_i32 = arith.constant 0 : i32
    %c0_i32_0 = arith.constant 0 : i32
    %c0_i32_1 = arith.constant 0 : i32
    return %c0_i32, %c0_i32_0 : i32, i32
  }
  func.func @transform_2(%arg0: i32) -> (i32, i32) {
    %c0_i32 = arith.constant 0 : i32
    %c0_i32_0 = arith.constant 0 : i32
    %c0_i32_1 = arith.constant 0 : i32
    return %c0_i32, %c0_i32_0 : i32, i32
  }
  func.func @transform_3(%arg0: i32) -> (i32, i32) {
    %c0_i32 = arith.constant 0 : i32
    %c0_i32_0 = arith.constant 0 : i32
    return %c0_i32, %arg0 : i32, i32
  }
}

module attributes {stable_mosaic.version = 11 : i64} {
  func.func @_conv_pool_kernel(%arg0: i32, %arg1: memref<4x72x2xf32, #tpu.memory_space<vmem>>, %arg2: memref<12x72xf32, #tpu.memory_space<vmem>>, %arg3: memref<12x1xf32, #tpu.memory_space<vmem>>, %arg4: memref<12x2xf32, #tpu.memory_space<vmem>>) attributes {dimension_semantics = [#tpu.dimension_semantics<parallel>], iteration_bounds = array<i64: 1>, scalar_prefetch = 0 : i64, scratch_operands = 0 : i64, tpu.core_type = #tpu.core_type<tc>, window_params = [{transform_indices = @transform_0, window_bounds = array<i64: 4, 72, 2>}, {pipeline_mode = #tpu.pipeline_mode<synchronous>, transform_indices = @transform_1, window_bounds = array<i64: 12, 72>}, {pipeline_mode = #tpu.pipeline_mode<synchronous>, transform_indices = @transform_2, window_bounds = array<i64: 12, 1>}, {transform_indices = @transform_3, window_bounds = array<i64: 12, 2>}]} {
    %c0 = arith.constant 0 : index
    %c0_0 = arith.constant 0 : index
    %0 = vector.load %arg2[%c0, %c0_0] : memref<12x72xf32, #tpu.memory_space<vmem>>, vector<12x72xf32>
    %c0_1 = arith.constant 0 : index
    %c0_2 = arith.constant 0 : index
    %1 = vector.load %arg3[%c0_1, %c0_2] : memref<12x1xf32, #tpu.memory_space<vmem>>, vector<12x1xf32>
    %c0_3 = arith.constant 0 : index
    %c0_4 = arith.constant 0 : index
    %c0_5 = arith.constant 0 : index
    %2 = vector.load %arg1[%c0_3, %c0_4, %c0_5] : memref<4x72x2xf32, #tpu.memory_space<vmem>>, vector<1x72x2xf32>
    %3 = vector.shape_cast %2 : vector<1x72x2xf32> to vector<72x2xf32>
    %cst = arith.constant dense<0.000000e+00> : vector<12x2xf32>
    %4 = tpu.matmul %0, %3, %cst {dimension_numbers = #tpu.dot_dimension_numbers<[1], [0], [0], [1], [0, 0, 1, 1], [], []>} : vector<12x72xf32>, vector<72x2xf32>, vector<12x2xf32> -> vector<12x2xf32>
    %5 = vector.broadcast %1 : vector<12x1xf32> to vector<12x2xf32>
    %6 = arith.addf %4, %5 : vector<12x2xf32>
    %cst_6 = arith.constant 0.000000e+00 : f32
    %7 = vector.broadcast %cst_6 : f32 to vector<12x2xf32>
    %8 = arith.maximumf %6, %7 : vector<12x2xf32>
    %c1 = arith.constant 1 : index
    %c0_7 = arith.constant 0 : index
    %c0_8 = arith.constant 0 : index
    %9 = vector.load %arg1[%c1, %c0_7, %c0_8] : memref<4x72x2xf32, #tpu.memory_space<vmem>>, vector<1x72x2xf32>
    %10 = vector.shape_cast %9 : vector<1x72x2xf32> to vector<72x2xf32>
    %cst_9 = arith.constant dense<0.000000e+00> : vector<12x2xf32>
    %11 = tpu.matmul %0, %10, %cst_9 {dimension_numbers = #tpu.dot_dimension_numbers<[1], [0], [0], [1], [0, 0, 1, 1], [], []>} : vector<12x72xf32>, vector<72x2xf32>, vector<12x2xf32> -> vector<12x2xf32>
    %12 = vector.broadcast %1 : vector<12x1xf32> to vector<12x2xf32>
    %13 = arith.addf %11, %12 : vector<12x2xf32>
    %cst_10 = arith.constant 0.000000e+00 : f32
    %14 = vector.broadcast %cst_10 : f32 to vector<12x2xf32>
    %15 = arith.maximumf %13, %14 : vector<12x2xf32>
    %16 = arith.maximumf %8, %15 : vector<12x2xf32>
    %c2 = arith.constant 2 : index
    %c0_11 = arith.constant 0 : index
    %c0_12 = arith.constant 0 : index
    %17 = vector.load %arg1[%c2, %c0_11, %c0_12] : memref<4x72x2xf32, #tpu.memory_space<vmem>>, vector<1x72x2xf32>
    %18 = vector.shape_cast %17 : vector<1x72x2xf32> to vector<72x2xf32>
    %cst_13 = arith.constant dense<0.000000e+00> : vector<12x2xf32>
    %19 = tpu.matmul %0, %18, %cst_13 {dimension_numbers = #tpu.dot_dimension_numbers<[1], [0], [0], [1], [0, 0, 1, 1], [], []>} : vector<12x72xf32>, vector<72x2xf32>, vector<12x2xf32> -> vector<12x2xf32>
    %20 = vector.broadcast %1 : vector<12x1xf32> to vector<12x2xf32>
    %21 = arith.addf %19, %20 : vector<12x2xf32>
    %cst_14 = arith.constant 0.000000e+00 : f32
    %22 = vector.broadcast %cst_14 : f32 to vector<12x2xf32>
    %23 = arith.maximumf %21, %22 : vector<12x2xf32>
    %c3 = arith.constant 3 : index
    %c0_15 = arith.constant 0 : index
    %c0_16 = arith.constant 0 : index
    %24 = vector.load %arg1[%c3, %c0_15, %c0_16] : memref<4x72x2xf32, #tpu.memory_space<vmem>>, vector<1x72x2xf32>
    %25 = vector.shape_cast %24 : vector<1x72x2xf32> to vector<72x2xf32>
    %cst_17 = arith.constant dense<0.000000e+00> : vector<12x2xf32>
    %26 = tpu.matmul %0, %25, %cst_17 {dimension_numbers = #tpu.dot_dimension_numbers<[1], [0], [0], [1], [0, 0, 1, 1], [], []>} : vector<12x72xf32>, vector<72x2xf32>, vector<12x2xf32> -> vector<12x2xf32>
    %27 = vector.broadcast %1 : vector<12x1xf32> to vector<12x2xf32>
    %28 = arith.addf %26, %27 : vector<12x2xf32>
    %cst_18 = arith.constant 0.000000e+00 : f32
    %29 = vector.broadcast %cst_18 : f32 to vector<12x2xf32>
    %30 = arith.maximumf %28, %29 : vector<12x2xf32>
    %31 = arith.maximumf %23, %30 : vector<12x2xf32>
    %32 = arith.maximumf %16, %31 : vector<12x2xf32>
    %c0_19 = arith.constant 0 : index
    %c0_20 = arith.constant 0 : index
    %33 = vector.load %arg4[%c0_19, %c0_20] : memref<12x2xf32, #tpu.memory_space<vmem>>, vector<12x2xf32>
    tpu.vector_store %arg4[%c0_19, %c0_20], %32 {strides = array<i32>} : memref<12x2xf32, #tpu.memory_space<vmem>>, vector<12x2xf32>,
    return
  }
  func.func @transform_0(%arg0: i32) -> (i32, i32, i32) {
    %c0_i32 = arith.constant 0 : i32
    %c0_i32_0 = arith.constant 0 : i32
    %c0_i32_1 = arith.constant 0 : i32
    return %c0_i32, %c0_i32_0, %arg0 : i32, i32, i32
  }
  func.func @transform_1(%arg0: i32) -> (i32, i32) {
    %c0_i32 = arith.constant 0 : i32
    %c0_i32_0 = arith.constant 0 : i32
    %c0_i32_1 = arith.constant 0 : i32
    return %c0_i32, %c0_i32_0 : i32, i32
  }
  func.func @transform_2(%arg0: i32) -> (i32, i32) {
    %c0_i32 = arith.constant 0 : i32
    %c0_i32_0 = arith.constant 0 : i32
    %c0_i32_1 = arith.constant 0 : i32
    return %c0_i32, %c0_i32_0 : i32, i32
  }
  func.func @transform_3(%arg0: i32) -> (i32, i32) {
    %c0_i32 = arith.constant 0 : i32
    %c0_i32_0 = arith.constant 0 : i32
    return %c0_i32, %arg0 : i32, i32
  }
}

module attributes {stable_mosaic.version = 11 : i64} {
  func.func @_dense_head_kernel(%arg0: memref<2x12xf32, #tpu.memory_space<vmem>>, %arg1: memref<12x32xf32, #tpu.memory_space<vmem>>, %arg2: memref<1x32xf32, #tpu.memory_space<vmem>>, %arg3: memref<32x32xf32, #tpu.memory_space<vmem>>, %arg4: memref<1x32xf32, #tpu.memory_space<vmem>>, %arg5: memref<32x32xf32, #tpu.memory_space<vmem>>, %arg6: memref<1x32xf32, #tpu.memory_space<vmem>>, %arg7: memref<32x32xf32, #tpu.memory_space<vmem>>, %arg8: memref<1x32xf32, #tpu.memory_space<vmem>>, %arg9: memref<32x5xf32, #tpu.memory_space<vmem>>, %arg10: memref<1x5xf32, #tpu.memory_space<vmem>>, %arg11: memref<2x5xf32, #tpu.memory_space<vmem>>) attributes {dimension_semantics = [], scalar_prefetch = 0 : i64, scratch_operands = 0 : i64, tpu.core_type = #tpu.core_type<tc>} {
    %c0 = arith.constant 0 : index
    %c0_0 = arith.constant 0 : index
    %0 = vector.load %arg0[%c0, %c0_0] : memref<2x12xf32, #tpu.memory_space<vmem>>, vector<2x12xf32>
    %c0_1 = arith.constant 0 : index
    %c0_2 = arith.constant 0 : index
    %1 = vector.load %arg1[%c0_1, %c0_2] : memref<12x32xf32, #tpu.memory_space<vmem>>, vector<12x32xf32>
    %cst = arith.constant dense<0.000000e+00> : vector<2x32xf32>
    %2 = tpu.matmul %0, %1, %cst {dimension_numbers = #tpu.dot_dimension_numbers<[1], [0], [0], [1], [0, 0, 1, 1], [], []>} : vector<2x12xf32>, vector<12x32xf32>, vector<2x32xf32> -> vector<2x32xf32>
    %c0_3 = arith.constant 0 : index
    %c0_4 = arith.constant 0 : index
    %3 = vector.load %arg2[%c0_3, %c0_4] : memref<1x32xf32, #tpu.memory_space<vmem>>, vector<1x32xf32>
    %4 = vector.broadcast %3 : vector<1x32xf32> to vector<2x32xf32>
    %5 = arith.addf %2, %4 : vector<2x32xf32>
    %cst_5 = arith.constant 0.000000e+00 : f32
    %6 = vector.broadcast %cst_5 : f32 to vector<2x32xf32>
    %7 = arith.maximumf %5, %6 : vector<2x32xf32>
    %c0_6 = arith.constant 0 : index
    %c0_7 = arith.constant 0 : index
    %8 = vector.load %arg3[%c0_6, %c0_7] : memref<32x32xf32, #tpu.memory_space<vmem>>, vector<32x32xf32>
    %cst_8 = arith.constant dense<0.000000e+00> : vector<2x32xf32>
    %9 = tpu.matmul %7, %8, %cst_8 {dimension_numbers = #tpu.dot_dimension_numbers<[1], [0], [0], [1], [0, 0, 1, 1], [], []>} : vector<2x32xf32>, vector<32x32xf32>, vector<2x32xf32> -> vector<2x32xf32>
    %c0_9 = arith.constant 0 : index
    %c0_10 = arith.constant 0 : index
    %10 = vector.load %arg4[%c0_9, %c0_10] : memref<1x32xf32, #tpu.memory_space<vmem>>, vector<1x32xf32>
    %11 = vector.broadcast %10 : vector<1x32xf32> to vector<2x32xf32>
    %12 = arith.addf %9, %11 : vector<2x32xf32>
    %cst_11 = arith.constant 0.000000e+00 : f32
    %13 = vector.broadcast %cst_11 : f32 to vector<2x32xf32>
    %14 = arith.maximumf %12, %13 : vector<2x32xf32>
    %c0_12 = arith.constant 0 : index
    %c0_13 = arith.constant 0 : index
    %15 = vector.load %arg5[%c0_12, %c0_13] : memref<32x32xf32, #tpu.memory_space<vmem>>, vector<32x32xf32>
    %cst_14 = arith.constant dense<0.000000e+00> : vector<2x32xf32>
    %16 = tpu.matmul %14, %15, %cst_14 {dimension_numbers = #tpu.dot_dimension_numbers<[1], [0], [0], [1], [0, 0, 1, 1], [], []>} : vector<2x32xf32>, vector<32x32xf32>, vector<2x32xf32> -> vector<2x32xf32>
    %c0_15 = arith.constant 0 : index
    %c0_16 = arith.constant 0 : index
    %17 = vector.load %arg6[%c0_15, %c0_16] : memref<1x32xf32, #tpu.memory_space<vmem>>, vector<1x32xf32>
    %18 = vector.broadcast %17 : vector<1x32xf32> to vector<2x32xf32>
    %19 = arith.addf %16, %18 : vector<2x32xf32>
    %cst_17 = arith.constant 0.000000e+00 : f32
    %20 = vector.broadcast %cst_17 : f32 to vector<2x32xf32>
    %21 = arith.maximumf %19, %20 : vector<2x32xf32>
    %c0_18 = arith.constant 0 : index
    %c0_19 = arith.constant 0 : index
    %22 = vector.load %arg7[%c0_18, %c0_19] : memref<32x32xf32, #tpu.memory_space<vmem>>, vector<32x32xf32>
    %cst_20 = arith.constant dense<0.000000e+00> : vector<2x32xf32>
    %23 = tpu.matmul %21, %22, %cst_20 {dimension_numbers = #tpu.dot_dimension_numbers<[1], [0], [0], [1], [0, 0, 1, 1], [], []>} : vector<2x32xf32>, vector<32x32xf32>, vector<2x32xf32> -> vector<2x32xf32>
    %c0_21 = arith.constant 0 : index
    %c0_22 = arith.constant 0 : index
    %24 = vector.load %arg8[%c0_21, %c0_22] : memref<1x32xf32, #tpu.memory_space<vmem>>, vector<1x32xf32>
    %25 = vector.broadcast %24 : vector<1x32xf32> to vector<2x32xf32>
    %26 = arith.addf %23, %25 : vector<2x32xf32>
    %cst_23 = arith.constant 0.000000e+00 : f32
    %27 = vector.broadcast %cst_23 : f32 to vector<2x32xf32>
    %28 = arith.maximumf %26, %27 : vector<2x32xf32>
    %c0_24 = arith.constant 0 : index
    %c0_25 = arith.constant 0 : index
    %29 = vector.load %arg9[%c0_24, %c0_25] : memref<32x5xf32, #tpu.memory_space<vmem>>, vector<32x5xf32>
    %cst_26 = arith.constant dense<0.000000e+00> : vector<2x5xf32>
    %30 = tpu.matmul %28, %29, %cst_26 {dimension_numbers = #tpu.dot_dimension_numbers<[1], [0], [0], [1], [0, 0, 1, 1], [], []>} : vector<2x32xf32>, vector<32x5xf32>, vector<2x5xf32> -> vector<2x5xf32>
    %c0_27 = arith.constant 0 : index
    %c0_28 = arith.constant 0 : index
    %31 = vector.load %arg10[%c0_27, %c0_28] : memref<1x5xf32, #tpu.memory_space<vmem>>, vector<1x5xf32>
    %32 = vector.broadcast %31 : vector<1x5xf32> to vector<2x5xf32>
    %33 = arith.addf %30, %32 : vector<2x5xf32>
    %c0_29 = arith.constant 0 : index
    %c0_30 = arith.constant 0 : index
    %34 = vector.load %arg11[%c0_29, %c0_30] : memref<2x5xf32, #tpu.memory_space<vmem>>, vector<2x5xf32>
    tpu.vector_store %arg11[%c0_29, %c0_30], %33 {strides = array<i32>} : memref<2x5xf32, #tpu.memory_space<vmem>>, vector<2x5xf32>,
    return
  }
}

</mosaic_0001>

<llo_original>
// kernel: cnn_forward.4
$region0: #{cnn_forward.4}
  #allocation0 [shape = 'u32[]', space=smem, size = 0x4, offset = 0x4, fixed_abs, tag = 'smem constant byte address 0x4 - core index']
  #allocation1 [shape = 'u32[144,128]{1,0:T(1,128)}', space=vmem, size = 0x12000, scoped, tag = 'internal scratch']
  %s0 = inlined_call_operand.vmem [shape: f32[4,32,512], index: 0, kind: input, shape index: {}]
  %s1 = inlined_call_operand.vmem [shape: f32[4,32], index: 1, kind: input, shape index: {}]
  %s2 = inlined_call_operand.vmem [shape: f32[4,1], index: 2, kind: input, shape index: {}]
  %s3 = inlined_call_operand.vmem [shape: f32[4,512], index: 3, kind: output, shape index: {}]
  %s4 = sld [smem:[#allocation0]]
  $region68: #{cnn_forward.4} parent=0
    _
  %s6 = ssub.s32 1, %s4
  %s7 = scalar_select 0, %s6, %s4
  $region1: #{cnn_forward.4} parent=0
    #allocation2 [shape = 'u8[262144]{0}', space=vmem, size = 0x40000, scoped, tag = 'input window, operand 0']
    loop: start=0, step=1, limit=4
    $region2: #{cnn_forward.4} parent=1 // loop_pre_header
      _
    $region3: #{cnn_forward.4} parent=1 // loop_header
      %s9 = sphi 0, %s13
      %p10 = scmp.ge.s32.totalorder %s9, 4
      %s19 = sphi 0, %s21
      %s22 = sphi 0, %s19
      %s23 = sphi 0, %s22
      %s39 = sphi 0, %s23
      %s43 = sphi 0, %s43
      %s45 = sphi 0, %s43
      %s46 = sphi 0, %s45
      %s60 = sphi 0, %s46
      %s64 = sphi 0, %s64
      %s66 = sphi 0, %s64
      %s67 = sphi 0, %s66
      %s81 = sphi 0, %s67
      %s87 = sphi 0, %s89
      %s90 = sphi 0, %s87
      %s91 = sphi 0, %s90
      %s107 = sphi 0, %s91
    $region4: #{cnn_forward.4} parent=1 // loop_header_branch
      %12 = sbr.rel (%p10) target = $region8
    $region5: #{cnn_forward.4} parent=1 // loop_body
      %s14 = ssub.s32 %s9, 1
      %s15 = ssub.s32 %s9, 2
      %s16 = sadd.s32 %s9, 1
      %s17 = ssub.s32 %s9, %s16
      %p18 = scmp.eq.s32.totalorder %s17, 0
      %s20 = sadd.s32 %s19, 1
      %s21 = scalar_select %p18, %s19, %s20
      %p24 = pneg %p18
      %p25 = scmp.eq.s32.totalorder %s9, 1
      %p26 = por %p24, %p25
      %p27 = scmp.ne.s32.totalorder %s19, %s22
      %p28 = scmp.eq.s32.totalorder %s9, 0
      %p29 = por %p27, %p28
      %p30 = scmp.ne.s32.totalorder %s19, %s22
      %p31 = scmp.eq.s32.totalorder %s14, 1
      %p32 = por %p30, %p31
      %p33 = scmp.ne.s32.totalorder %s22, %s23
      %p34 = scmp.eq.s32.totalorder %s14, 0
      %p35 = por %p33, %p34
      %p36 = scmp.ne.s32.totalorder %s22, %s23
      %p37 = scmp.eq.s32.totalorder %s15, 1
      %p38 = por %p36, %p37
      %p40 = scmp.ne.s32.totalorder %s23, %s39
      %p41 = scmp.eq.s32.totalorder %s15, 0
      %p42 = por %p40, %p41
      %s44 = sadd.s32 %s43, 1
      %p47 = scmp.eq.s32.totalorder %s9, 1
      %p48 = scmp.ne.s32.totalorder %s43, %s45
      %p49 = scmp.eq.s32.totalorder %s9, 0
      %p50 = por %p48, %p49
      %p51 = scmp.ne.s32.totalorder %s43, %s45
      %p52 = scmp.eq.s32.totalorder %s14, 1
      %p53 = por %p51, %p52
      %p54 = scmp.ne.s32.totalorder %s45, %s46
      %p55 = scmp.eq.s32.totalorder %s14, 0
      %p56 = por %p54, %p55
      %p57 = scmp.ne.s32.totalorder %s45, %s46
      %p58 = scmp.eq.s32.totalorder %s15, 1
      %p59 = por %p57, %p58
      %p61 = scmp.ne.s32.totalorder %s46, %s60
      %p62 = scmp.eq.s32.totalorder %s15, 0
      %p63 = por %p61, %p62
      %s65 = sadd.s32 %s64, 1
      %p68 = scmp.eq.s32.totalorder %s9, 1
      %p69 = scmp.ne.s32.totalorder %s64, %s66
      %p70 = scmp.eq.s32.totalorder %s9, 0
      %p71 = por %p69, %p70
      %p72 = scmp.ne.s32.totalorder %s64, %s66
      %p73 = scmp.eq.s32.totalorder %s14, 1
      %p74 = por %p72, %p73
      %p75 = scmp.ne.s32.totalorder %s66, %s67
      %p76 = scmp.eq.s32.totalorder %s14, 0
      %p77 = por %p75, %p76
      %p78 = scmp.ne.s32.totalorder %s66, %s67
      %p79 = scmp.eq.s32.totalorder %s15, 1
      %p80 = por %p78, %p79
      %p82 = scmp.ne.s32.totalorder %s67, %s81
      %p83 = scmp.eq.s32.totalorder %s15, 0
      %p84 = por %p82, %p83
      %s85 = ssub.s32 %s9, %s16
      %p86 = scmp.eq.s32.totalorder %s85, 0
      %s88 = sadd.s32 %s87, 1
      %s89 = scalar_select %p86, %s87, %s88
      %p92 = pneg %p86
      %p93 = scmp.eq.s32.totalorder %s9, 1
      %p94 = por %p92, %p93
      %p95 = scmp.ne.s32.totalorder %s87, %s90
      %p96 = scmp.eq.s32.totalorder %s9, 0
      %p97 = por %p95, %p96
      %p98 = scmp.ne.s32.totalorder %s87, %s90
      %p99 = scmp.eq.s32.totalorder %s14, 1
      %p100 = por %p98, %p99
      %p101 = scmp.ne.s32.totalorder %s90, %s91
      %p102 = scmp.eq.s32.totalorder %s14, 0
      %p103 = por %p101, %p102
      %p104 = scmp.ne.s32.totalorder %s90, %s91
      %p105 = scmp.eq.s32.totalorder %s15, 1
      %p106 = por %p104, %p105
      %p108 = scmp.ne.s32.totalorder %s91, %s107
      %p109 = scmp.eq.s32.totalorder %s15, 0
      %p110 = por %p108, %p109
      %p111 = scmp.le.s32.totalorder 1, %s9
      %p112 = scmp.lt.s32.totalorder %s9, 3
      %p113 = pnand %p111, %p112
      %p114 = pneg %p113
      // Predicated region
      $region9: #{cnn_forward.4} parent=5 // pred_check
        _
      $region10: #{cnn_forward.4} parent=5 // pred_check_branch
        %116 = sbr.rel (%p113) target = $region12
      $region11: #{cnn_forward.4} parent=5 // pred_region
        %s117 = ssub.s32 %s9, 1
        // Predicated region
        $region13: #{cnn_forward.4} parent=11 // pred_check
          %p118 = pneg %p56
        $region14: #{cnn_forward.4} parent=11 // pred_check_branch
          %120 = sbr.rel (%p118) target = $region16
        $region15: #{cnn_forward.4} parent=11 // pred_region
          _
        $region16: #{cnn_forward.4} parent=11 // pred_fallthru
          _
        // Predicated region
        $region17: #{cnn_forward.4} parent=11 // pred_check
          %p121 = pneg %p77
        $region18: #{cnn_forward.4} parent=11 // pred_check_branch
          %123 = sbr.rel (%p121) target = $region20
        $region19: #{cnn_forward.4} parent=11 // pred_region
          _
        $region20: #{cnn_forward.4} parent=11 // pred_fallthru
          _
      $region12: #{cnn_forward.4} parent=5 // pred_fallthru
        _
      %p124 = scmp.lt.s32.totalorder %s9, 2
      // Predicated region
      $region21: #{cnn_forward.4} parent=5 // pred_check
        %p125 = pneg %p124
      $region22: #{cnn_forward.4} parent=5 // pred_check_branch
        %127 = sbr.rel (%p125) target = $region24
      $region23: #{cnn_forward.4} parent=5 // pred_region
        // Predicated region
        $region25: #{cnn_forward.4} parent=23 // pred_check
          %p128 = pneg %p29
        $region26: #{cnn_forward.4} parent=23 // pred_check_branch
          %130 = sbr.rel (%p128) target = $region28
        $region27: #{cnn_forward.4} parent=23 // pred_region
          %s131 = sand.u32 %s19, 1
          %s132 = sand.u32 %s19, 1
          %s133 = smul.addr %s132, 256
          %s134 = scalar_lea.vmem [#allocation2], %s133
          %s135 = smul.u32 2, %s9
          %s136 = smul.addr %s135, 8
          %s137 = scalar_lea.vmem %s0, %s136
          // Predicated region
          $region29: #{cnn_forward.4} parent=27 // pred_check
            _
          $region30: #{cnn_forward.4} parent=27 // pred_check_branch
            %139 = sbr.rel (0) target = $region32
          $region31: #{cnn_forward.4} parent=27 // pred_region
            // Predicated region
            $region33: #{cnn_forward.4} parent=31 // pred_check
              _
            $region34: #{cnn_forward.4} parent=31 // pred_check_branch
              %141 = sbr.rel (0) target = $region36
            $region35: #{cnn_forward.4} parent=31 // pred_region
              loop: start=0, step=1, limit=1
              $region37: #{cnn_forward.4} parent=35 // loop_pre_header
                _
              $region38: #{cnn_forward.4} parent=35 // loop_header
                %s143 = sphi 0, %s147
                %p144 = scmp.ge.s32.totalorder %s143, 1
                %s148 = sphi %s137, %s137
                %s149 = sphi %s134, %s134
              $region39: #{cnn_forward.4} parent=35 // loop_header_branch
                %146 = sbr.rel (%p144) target = $region43
              $region40: #{cnn_forward.4} parent=35 // loop_body
                %v150 = vld [vmem:[%s148] sm:$0xff]
                %151 = vst [vmem:[%s149] sm:$0xff] %v150
                %v152 = vld [vmem:[%s148 + $0x8] sm:$0xff]
                %153 = vst [vmem:[%s149 + $0x8] sm:$0xff] %v152
                %v154 = vld [vmem:[%s148 + $0x20] sm:$0xff]
                %155 = vst [vmem:[%s149 + $0x10] sm:$0xff] %v154
                %v156 = vld [vmem:[%s148 + $0x28] sm:$0xff]
                %157 = vst [vmem:[%s149 + $0x18] sm:$0xff] %v156
                %v158 = vld [vmem:[%s148 + $0x40] sm:$0xff]
                %159 = vst [vmem:[%s149 + $0x20] sm:$0xff] %v158
                %v160 = vld [vmem:[%s148 + $0x48] sm:$0xff]
                %161 = vst [vmem:[%s149 + $0x28] sm:$0xff] %v160
                %v162 = vld [vmem:[%s148 + $0x60] sm:$0xff]
                %163 = vst [vmem:[%s149 + $0x30] sm:$0xff] %v162
                %v164 = vld [vmem:[%s148 + $0x68] sm:$0xff]
                %165 = vst [vmem:[%s149 + $0x38] sm:$0xff] %v164
                %v166 = vld [vmem:[%s148 + $0x80] sm:$0xff]
                %167 = vst [vmem:[%s149 + $0x40] sm:$0xff] %v166
                %v168 = vld [vmem:[%s148 + $0x88] sm:$0xff]
                %169 = vst [vmem:[%s149 + $0x48] sm:$0xff] %v168
                %v170 = vld [vmem:[%s148 + $0xa0] sm:$0xff]
                %171 = vst [vmem:[%s149 + $0x50] sm:$0xff] %v170
                %v172 = vld [vmem:[%s148 + $0xa8] sm:$0xff]
                %173 = vst [vmem:[%s149 + $0x58] sm:$0xff] %v172
                %v174 = vld [vmem:[%s148 + $0xc0] sm:$0xff]
                %175 = vst [vmem:[%s149 + $0x60] sm:$0xff] %v174
                %v176 = vld [vmem:[%s148 + $0xc8] sm:$0xff]
                %177 = vst [vmem:[%s149 + $0x68] sm:$0xff] %v176
                %v178 = vld [vmem:[%s148 + $0xe0] sm:$0xff]
                %179 = vst [vmem:[%s149 + $0x70] sm:$0xff] %v178
                %v180 = vld [vmem:[%s148 + $0xe8] sm:$0xff]
                %181 = vst [vmem:[%s149 + $0x78] sm:$0xff] %v180
                %v182 = vld [vmem:[%s148 + $0x100] sm:$0xff]
                %183 = vst [vmem:[%s149 + $0x80] sm:$0xff] %v182
                %v184 = vld [vmem:[%s148 + $0x108] sm:$0xff]
                %185 = vst [vmem:[%s149 + $0x88] sm:$0xff] %v184
                %v186 = vld [vmem:[%s148 + $0x120] sm:$0xff]
                %187 = vst [vmem:[%s149 + $0x90] sm:$0xff] %v186
                %v188 = vld [vmem:[%s148 + $0x128] sm:$0xff]
                %189 = vst [vmem:[%s149 + $0x98] sm:$0xff] %v188
                %v190 = vld [vmem:[%s148 + $0x140] sm:$0xff]
                %191 = vst [vmem:[%s149 + $0xa0] sm:$0xff] %v190
                %v192 = vld [vmem:[%s148 + $0x148] sm:$0xff]
                %193 = vst [vmem:[%s149 + $0xa8] sm:$0xff] %v192
                %v194 = vld [vmem:[%s148 + $0x160] sm:$0xff]
                %195 = vst [vmem:[%s149 + $0xb0] sm:$0xff] %v194
                %v196 = vld [vmem:[%s148 + $0x168] sm:$0xff]
                %197 = vst [vmem:[%s149 + $0xb8] sm:$0xff] %v196
                %v198 = vld [vmem:[%s148 + $0x180] sm:$0xff]
                %199 = vst [vmem:[%s149 + $0xc0] sm:$0xff] %v198
                %v200 = vld [vmem:[%s148 + $0x188] sm:$0xff]
                %201 = vst [vmem:[%s149 + $0xc8] sm:$0xff] %v200
                %v202 = vld [vmem:[%s148 + $0x1a0] sm:$0xff]
                %203 = vst [vmem:[%s149 + $0xd0] sm:$0xff] %v202
                %v204 = vld [vmem:[%s148 + $0x1a8] sm:$0xff]
                %205 = vst [vmem:[%s149 + $0xd8] sm:$0xff] %v204
                %v206 = vld [vmem:[%s148 + $0x1c0] sm:$0xff]
                %207 = vst [vmem:[%s149 + $0xe0] sm:$0xff] %v206
                %v208 = vld [vmem:[%s148 + $0x1c8] sm:$0xff]
                %209 = vst [vmem:[%s149 + $0xe8] sm:$0xff] %v208
                %v210 = vld [vmem:[%s148 + $0x1e0] sm:$0xff]
                %211 = vst [vmem:[%s149 + $0xf0] sm:$0xff] %v210
                %v212 = vld [vmem:[%s148 + $0x1e8] sm:$0xff]
                %213 = vst [vmem:[%s149 + $0xf8] sm:$0xff] %v212
              $region41: #{cnn_forward.4} parent=35 // loop_footer
                %s147 = sadd.s32 1, %s143
              $region42: #{cnn_forward.4} parent=35 // loop_footer_branch
                %142 = sbr.rel target = $region38
              $region43: #{cnn_forward.4} parent=35 // loop_exit
                _
            $region36: #{cnn_forward.4} parent=31 // pred_fallthru
              _
            // Predicated region
            $region44: #{cnn_forward.4} parent=31 // pred_check
              _
            $region45: #{cnn_forward.4} parent=31 // pred_check_branch
              %215 = sbr.rel target = $region47
            $region46: #{cnn_forward.4} parent=31 // pred_region
              _
            $region47: #{cnn_forward.4} parent=31 // pred_fallthru
              _
          $region32: #{cnn_forward.4} parent=27 // pred_fallthru
            _
          %216 = vnop
        $region28: #{cnn_forward.4} parent=23 // pred_fallthru
          _
      $region24: #{cnn_forward.4} parent=5 // pred_fallthru
        _
      %p217 = scmp.le.s32.totalorder 1, %s9
      %p218 = scmp.lt.s32.totalorder %s9, 3
      %p219 = pnand %p217, %p218
      %p220 = pneg %p219
      // Predicated region
      $region48: #{cnn_forward.4} parent=5 // pred_check
        _
      $region49: #{cnn_forward.4} parent=5 // pred_check_branch
        %222 = sbr.rel (%p219) target = $region51
      $region50: #{cnn_forward.4} parent=5 // pred_region
        %s223 = ssub.s32 %s9, 1
        %s224 = sand.u32 %s22, 1
        %s225 = sand.u32 %s22, 1
        %s226 = smul.addr %s225, 256
        %s227 = scalar_lea.vmem [#allocation2], %s226
        // Predicated region
        $region52: #{cnn_forward.4} parent=50 // pred_check
          %p228 = pneg %p35
        $region53: #{cnn_forward.4} parent=50 // pred_check_branch
          %230 = sbr.rel (%p228) target = $region55
        $region54: #{cnn_forward.4} parent=50 // pred_region
          _
        $region55: #{cnn_forward.4} parent=50 // pred_fallthru
          _
        %s231 = sand.u32 %s22, 1
        %s232 = sand.u32 %s22, 1
        %s233 = smul.addr %s232, 256
        %s234 = scalar_lea.vmem [#allocation2], %s233
        %p235 = pneg %p35
        %p236 = pneg %p32
        %p237 = pneg %p56
        %p238 = pneg %p53
        %p239 = pneg %p77
        %p240 = pneg %p74
        %p241 = pneg %p103
        %p242 = pneg %p100
        %s243 = smul.u32 2, %s14
        %p244 = scmp.lt.s32.totalorder %s243, 3
        %s245 = scalar_select %p244, %s243, 3
        %s246 = smul.addr %s245, 4
        %s247 = scalar_lea.vmem %s3, %s246
        %s248 = smul.u32 2, %s14
        %s249 = smul.u32 2, %s14
        %p250 = scmp.lt.s32.totalorder %s249, 3
        %s251 = scalar_select %p250, %s249, 3
        %s252 = smul.addr %s251, 4
        %s253 = scalar_lea.vmem %s3, %s252
        %s254 = smul.u32 2, %s14
        %v255 = vld [vmem:[%s1] sm:$0xf]
        %v256 = vld [vmem:[%s2] sm:$0xf]
        %v257 = vld [vmem:[%s227] sm:$0xff]
        %v258 = vld [vmem:[%s227 + $0x8] sm:$0xff]
        %v259 = vld [vmem:[%s227 + $0x10] sm:$0xff]
        %v260 = vld [vmem:[%s227 + $0x18] sm:$0xff]
        %v261 = vld [vmem:[%s227 + $0x20] sm:$0xff]
        %v262 = vld [vmem:[%s227 + $0x28] sm:$0xff]
        %v263 = vld [vmem:[%s227 + $0x30] sm:$0xff]
        %v264 = vld [vmem:[%s227 + $0x38] sm:$0xff]
        %266 = vset.pattern.permute.xlu0 0
        %267 = vperm.xlu0 %266, %v256
        %v268 = vpop.permute.xlu0 %267
        %vm270 = vcmask 261120
        %v272 = vsel %vm270, %v255, 0
        %274 = vmatprep.subr.mxu0 %v258
        %275 = vmatpush1.msra.mxu0 %v257
        %276 = vmatprep.subr.mxu0 %v260
        %277 = vmatpush1.msra.mxu0 %v259
        %278 = vmatprep.subr.mxu0 %v262
        %279 = vmatpush1.msra.mxu0 %v261
        %280 = vmatprep.subr.mxu0 %v264
        %281 = vmatpush1.msra.mxu0 %v263
        %282 = vmatprep.subr.mxu0 0.0
        %283 = vmatpush1.msra.mxu0 0.0
        %284 = vmatprep.subr.mxu0 0.0
        %285 = vmatpush1.msra.mxu0 0.0
        %286 = vmatprep.subr.mxu0 0.0
        %287 = vmatpush1.msra.mxu0 0.0
        %288 = vmatprep.subr.mxu0 0.0
        %289 = vmatpush1.msra.mxu0 0.0
        %290 = vmatprep.subr.mxu0 0.0
        %291 = vmatpush1.msra.mxu0 0.0
        %292 = vmatprep.subr.mxu0 0.0
        %293 = vmatpush1.msra.mxu0 0.0
        %294 = vmatprep.subr.mxu0 0.0
        %295 = vmatpush1.msra.mxu0 0.0
        %296 = vmatprep.subr.mxu0 0.0
        %297 = vmatpush1.msra.mxu0 0.0
        %298 = vmatprep.subr.mxu0 0.0
        %299 = vmatpush1.msra.mxu0 0.0
        %300 = vmatprep.subr.mxu0 0.0
        %301 = vmatpush1.msra.mxu0 0.0
        %302 = vmatprep.subr.mxu0 0.0
        %303 = vmatpush1.msra.mxu0 0.0
        %304 = vmatprep.subr.mxu0 0.0
        %305 = vmatpush1.msra.mxu0 0.0
        %306 = vmatprep.subr.mxu0 0.0
        %307 = vmatpush1.msra.mxu0 0.0
        %308 = vmatprep.subr.mxu0 0.0
        %309 = vmatpush1.msra.mxu0 0.0
        %310 = vmatprep.subr.mxu0 0.0
        %311 = vmatpush1.msra.mxu0 0.0
        %312 = vmatprep.subr.mxu0 0.0
        %313 = vmatpush1.msra.mxu0 0.0
        %314 = vmatprep.subr.mxu0 0.0
        %315 = vmatpush1.msra.mxu0 0.0
        %316 = vmatprep.subr.mxu0 0.0
        %317 = vmatpush1.msra.mxu0 0.0
        %318 = vmatprep.subr.mxu0 0.0
        %319 = vmatpush1.msra.mxu0 0.0
        %320 = vmatprep.subr.mxu0 0.0
        %321 = vmatpush1.msra.mxu0 0.0
        %322 = vmatprep.subr.mxu0 0.0
        %323 = vmatpush1.msra.mxu0 0.0
        %324 = vmatprep.subr.mxu0 0.0
        %325 = vmatpush1.msra.mxu0 0.0
        %326 = vmatprep.subr.mxu0 0.0
        %327 = vmatpush1.msra.mxu0 0.0
        %328 = vmatprep.subr.mxu0 0.0
        %329 = vmatpush1.msra.mxu0 0.0
        %330 = vmatprep.subr.mxu0 0.0
        %331 = vmatpush1.msra.mxu0 0.0
        %332 = vmatprep.subr.mxu0 0.0
        %333 = vmatpush1.msra.mxu0 0.0
        %334 = vmatprep.subr.mxu0 0.0
        %335 = vmatpush1.msra.mxu0 0.0
        %336 = vmatprep.subr.mxu0 0.0
        %337 = vmatpush1.msra.mxu0 0.0
        %338 = vmatprep.mubr.f32.mxu0 0.0
        %339 = vmatmul.mubr.f32.gmra.mrb[0].mxu0 %v272
        %v340 = vpop.f32.mrb[0].mxu0
        %v341 = vadd.f32 %v268, %v340
        %v342 = vpop.f32.mrb[0].mxu0
        %v343 = vadd.f32 %v268, %v342
        %344 = vdwg.mxu0
        %v345 = vmax.f32 %v341, 0.0
        %v346 = vmax.f32 %v343, 0.0
        %s347 = scalar_lea.vmem %s227, 64 [#allocation2]
        %v348 = vld [vmem:[%s347] sm:$0xff]
        %v349 = vld [vmem:[%s347 + $0x8] sm:$0xff]
        %v350 = vld [vmem:[%s347 + $0x10] sm:$0xff]
        %v351 = vld [vmem:[%s347 + $0x18] sm:$0xff]
        %v352 = vld [vmem:[%s347 + $0x20] sm:$0xff]
        %v353 = vld [vmem:[%s347 + $0x28] sm:$0xff]
        %v354 = vld [vmem:[%s347 + $0x30] sm:$0xff]
        %v355 = vld [vmem:[%s347 + $0x38] sm:$0xff]
        %356 = vmatprep.subr.mxu0 %v349
        %357 = vmatpush1.msra.mxu0 %v348
        %358 = vmatprep.subr.mxu0 %v351
        %359 = vmatpush1.msra.mxu0 %v350
        %360 = vmatprep.subr.mxu0 %v353
        %361 = vmatpush1.msra.mxu0 %v352
        %362 = vmatprep.subr.mxu0 %v355
        %363 = vmatpush1.msra.mxu0 %v354
        %364 = vmatprep.subr.mxu0 0.0
        %365 = vmatpush1.msra.mxu0 0.0
        %366 = vmatprep.subr.mxu0 0.0
        %367 = vmatpush1.msra.mxu0 0.0
        %368 = vmatprep.subr.mxu0 0.0
        %369 = vmatpush1.msra.mxu0 0.0
        %370 = vmatprep.subr.mxu0 0.0
        %371 = vmatpush1.msra.mxu0 0.0
        %372 = vmatprep.subr.mxu0 0.0
        %373 = vmatpush1.msra.mxu0 0.0
        %374 = vmatprep.subr.mxu0 0.0
        %375 = vmatpush1.msra.mxu0 0.0
        %376 = vmatprep.subr.mxu0 0.0
        %377 = vmatpush1.msra.mxu0 0.0
        %378 = vmatprep.subr.mxu0 0.0
        %379 = vmatpush1.msra.mxu0 0.0
        %380 = vmatprep.subr.mxu0 0.0
        %381 = vmatpush1.msra.mxu0 0.0
        %382 = vmatprep.subr.mxu0 0.0
        %383 = vmatpush1.msra.mxu0 0.0
        %384 = vmatprep.subr.mxu0 0.0
        %385 = vmatpush1.msra.mxu0 0.0
        %386 = vmatprep.subr.mxu0 0.0
        %387 = vmatpush1.msra.mxu0 0.0
        %388 = vmatprep.subr.mxu0 0.0
        %389 = vmatpush1.msra.mxu0 0.0
        %390 = vmatprep.subr.mxu0 0.0
        %391 = vmatpush1.msra.mxu0 0.0
        %392 = vmatprep.subr.mxu0 0.0
        %393 = vmatpush1.msra.mxu0 0.0
        %394 = vmatprep.subr.mxu0 0.0
        %395 = vmatpush1.msra.mxu0 0.0
        %396 = vmatprep.subr.mxu0 0.0
        %397 = vmatpush1.msra.mxu0 0.0
        %398 = vmatprep.subr.mxu0 0.0
        %399 = vmatpush1.msra.mxu0 0.0
        %400 = vmatprep.subr.mxu0 0.0
        %401 = vmatpush1.msra.mxu0 0.0
        %402 = vmatprep.subr.mxu0 0.0
        %403 = vmatpush1.msra.mxu0 0.0
        %404 = vmatprep.subr.mxu0 0.0
        %405 = vmatpush1.msra.mxu0 0.0
        %406 = vmatprep.subr.mxu0 0.0
        %407 = vmatpush1.msra.mxu0 0.0
        %408 = vmatprep.subr.mxu0 0.0
        %409 = vmatpush1.msra.mxu0 0.0
        %410 = vmatprep.subr.mxu0 0.0
        %411 = vmatpush1.msra.mxu0 0.0
        %412 = vmatprep.subr.mxu0 0.0
        %413 = vmatpush1.msra.mxu0 0.0
        %414 = vmatprep.subr.mxu0 0.0
        %415 = vmatpush1.msra.mxu0 0.0
        %416 = vmatprep.subr.mxu0 0.0
        %417 = vmatpush1.msra.mxu0 0.0
        %418 = vmatprep.subr.mxu0 0.0
        %419 = vmatpush1.msra.mxu0 0.0
        %420 = vmatprep.mubr.f32.mxu0 0.0
        %421 = vmatmul.mubr.f32.gmra.mrb[0].mxu0 %v272
        %v422 = vpop.f32.mrb[0].mxu0
        %v423 = vadd.f32 %v268, %v422
        %v424 = vpop.f32.mrb[0].mxu0
        %v425 = vadd.f32 %v268, %v424
        %426 = vdwg.mxu0
        %v427 = vmax.f32 %v423, 0.0
        %v428 = vmax.f32 %v425, 0.0
        %v429 = vmax.f32 %v345, %v427
        %v430 = vmax.f32 %v346, %v428
        %s431 = scalar_lea.vmem %s227, 128 [#allocation2]
        %v432 = vld [vmem:[%s431] sm:$0xff]
        %v433 = vld [vmem:[%s431 + $0x8] sm:$0xff]
        %v434 = vld [vmem:[%s431 + $0x10] sm:$0xff]
        %v435 = vld [vmem:[%s431 + $0x18] sm:$0xff]
        %v436 = vld [vmem:[%s431 + $0x20] sm:$0xff]
        %v437 = vld [vmem:[%s431 + $0x28] sm:$0xff]
        %v438 = vld [vmem:[%s431 + $0x30] sm:$0xff]
        %v439 = vld [vmem:[%s431 + $0x38] sm:$0xff]
        %440 = vmatprep.subr.mxu0 %v433
        %441 = vmatpush1.msra.mxu0 %v432
        %442 = vmatprep.subr.mxu0 %v435
        %443 = vmatpush1.msra.mxu0 %v434
        %444 = vmatprep.subr.mxu0 %v437
        %445 = vmatpush1.msra.mxu0 %v436
        %446 = vmatprep.subr.mxu0 %v439
        %447 = vmatpush1.msra.mxu0 %v438
        %448 = vmatprep.subr.mxu0 0.0
        %449 = vmatpush1.msra.mxu0 0.0
        %450 = vmatprep.subr.mxu0 0.0
        %451 = vmatpush1.msra.mxu0 0.0
        %452 = vmatprep.subr.mxu0 0.0
        %453 = vmatpush1.msra.mxu0 0.0
        %454 = vmatprep.subr.mxu0 0.0
        %455 = vmatpush1.msra.mxu0 0.0
        %456 = vmatprep.subr.mxu0 0.0
        %457 = vmatpush1.msra.mxu0 0.0
        %458 = vmatprep.subr.mxu0 0.0
        %459 = vmatpush1.msra.mxu0 0.0
        %460 = vmatprep.subr.mxu0 0.0
        %461 = vmatpush1.msra.mxu0 0.0
        %462 = vmatprep.subr.mxu0 0.0
        %463 = vmatpush1.msra.mxu0 0.0
        %464 = vmatprep.subr.mxu0 0.0
        %465 = vmatpush1.msra.mxu0 0.0
        %466 = vmatprep.subr.mxu0 0.0
        %467 = vmatpush1.msra.mxu0 0.0
        %468 = vmatprep.subr.mxu0 0.0
        %469 = vmatpush1.msra.mxu0 0.0
        %470 = vmatprep.subr.mxu0 0.0
        %471 = vmatpush1.msra.mxu0 0.0
        %472 = vmatprep.subr.mxu0 0.0
        %473 = vmatpush1.msra.mxu0 0.0
        %474 = vmatprep.subr.mxu0 0.0
        %475 = vmatpush1.msra.mxu0 0.0
        %476 = vmatprep.subr.mxu0 0.0
        %477 = vmatpush1.msra.mxu0 0.0
        %478 = vmatprep.subr.mxu0 0.0
        %479 = vmatpush1.msra.mxu0 0.0
        %480 = vmatprep.subr.mxu0 0.0
        %481 = vmatpush1.msra.mxu0 0.0
        %482 = vmatprep.subr.mxu0 0.0
        %483 = vmatpush1.msra.mxu0 0.0
        %484 = vmatprep.subr.mxu0 0.0
        %485 = vmatpush1.msra.mxu0 0.0
        %486 = vmatprep.subr.mxu0 0.0
        %487 = vmatpush1.msra.mxu0 0.0
        %488 = vmatprep.subr.mxu0 0.0
        %489 = vmatpush1.msra.mxu0 0.0
        %490 = vmatprep.subr.mxu0 0.0
        %491 = vmatpush1.msra.mxu0 0.0
        %492 = vmatprep.subr.mxu0 0.0
        %493 = vmatpush1.msra.mxu0 0.0
        %494 = vmatprep.subr.mxu0 0.0
        %495 = vmatpush1.msra.mxu0 0.0
        %496 = vmatprep.subr.mxu0 0.0
        %497 = vmatpush1.msra.mxu0 0.0
        %498 = vmatprep.subr.mxu0 0.0
        %499 = vmatpush1.msra.mxu0 0.0
        %500 = vmatprep.subr.mxu0 0.0
        %501 = vmatpush1.msra.mxu0 0.0
        %502 = vmatprep.subr.mxu0 0.0
        %503 = vmatpush1.msra.mxu0 0.0
        %504 = vmatprep.mubr.f32.mxu0 0.0
        %505 = vmatmul.mubr.f32.gmra.mrb[0].mxu0 %v272
        %v506 = vpop.f32.mrb[0].mxu0
        %v507 = vadd.f32 %v268, %v506
        %v508 = vpop.f32.mrb[0].mxu0
        %v509 = vadd.f32 %v268, %v508
        %510 = vdwg.mxu0
        %v511 = vmax.f32 %v507, 0.0
        %v512 = vmax.f32 %v509, 0.0
        %s513 = scalar_lea.vmem %s227, 192 [#allocation2]
        %v514 = vld [vmem:[%s513] sm:$0xff]
        %v515 = vld [vmem:[%s513 + $0x8] sm:$0xff]
        %v516 = vld [vmem:[%s513 + $0x10] sm:$0xff]
        %v517 = vld [vmem:[%s513 + $0x18] sm:$0xff]
        %v518 = vld [vmem:[%s513 + $0x20] sm:$0xff]
        %v519 = vld [vmem:[%s513 + $0x28] sm:$0xff]
        %v520 = vld [vmem:[%s513 + $0x30] sm:$0xff]
        %v521 = vld [vmem:[%s513 + $0x38] sm:$0xff]
        %522 = vmatprep.subr.mxu0 %v515
        %523 = vmatpush1.msra.mxu0 %v514
        %524 = vmatprep.subr.mxu0 %v517
        %525 = vmatpush1.msra.mxu0 %v516
        %526 = vmatprep.subr.mxu0 %v519
        %527 = vmatpush1.msra.mxu0 %v518
        %528 = vmatprep.subr.mxu0 %v521
        %529 = vmatpush1.msra.mxu0 %v520
        %530 = vmatprep.subr.mxu0 0.0
        %531 = vmatpush1.msra.mxu0 0.0
        %532 = vmatprep.subr.mxu0 0.0
        %533 = vmatpush1.msra.mxu0 0.0
        %534 = vmatprep.subr.mxu0 0.0
        %535 = vmatpush1.msra.mxu0 0.0
        %536 = vmatprep.subr.mxu0 0.0
        %537 = vmatpush1.msra.mxu0 0.0
        %538 = vmatprep.subr.mxu0 0.0
        %539 = vmatpush1.msra.mxu0 0.0
        %540 = vmatprep.subr.mxu0 0.0
        %541 = vmatpush1.msra.mxu0 0.0
        %542 = vmatprep.subr.mxu0 0.0
        %543 = vmatpush1.msra.mxu0 0.0
        %544 = vmatprep.subr.mxu0 0.0
        %545 = vmatpush1.msra.mxu0 0.0
        %546 = vmatprep.subr.mxu0 0.0
        %547 = vmatpush1.msra.mxu0 0.0
        %548 = vmatprep.subr.mxu0 0.0
        %549 = vmatpush1.msra.mxu0 0.0
        %550 = vmatprep.subr.mxu0 0.0
        %551 = vmatpush1.msra.mxu0 0.0
        %552 = vmatprep.subr.mxu0 0.0
        %553 = vmatpush1.msra.mxu0 0.0
        %554 = vmatprep.subr.mxu0 0.0
        %555 = vmatpush1.msra.mxu0 0.0
        %556 = vmatprep.subr.mxu0 0.0
        %557 = vmatpush1.msra.mxu0 0.0
        %558 = vmatprep.subr.mxu0 0.0
        %559 = vmatpush1.msra.mxu0 0.0
        %560 = vmatprep.subr.mxu0 0.0
        %561 = vmatpush1.msra.mxu0 0.0
        %562 = vmatprep.subr.mxu0 0.0
        %563 = vmatpush1.msra.mxu0 0.0
        %564 = vmatprep.subr.mxu0 0.0
        %565 = vmatpush1.msra.mxu0 0.0
        %566 = vmatprep.subr.mxu0 0.0
        %567 = vmatpush1.msra.mxu0 0.0
        %568 = vmatprep.subr.mxu0 0.0
        %569 = vmatpush1.msra.mxu0 0.0
        %570 = vmatprep.subr.mxu0 0.0
        %571 = vmatpush1.msra.mxu0 0.0
        %572 = vmatprep.subr.mxu0 0.0
        %573 = vmatpush1.msra.mxu0 0.0
        %574 = vmatprep.subr.mxu0 0.0
        %575 = vmatpush1.msra.mxu0 0.0
        %576 = vmatprep.subr.mxu0 0.0
        %577 = vmatpush1.msra.mxu0 0.0
        %578 = vmatprep.subr.mxu0 0.0
        %579 = vmatpush1.msra.mxu0 0.0
        %580 = vmatprep.subr.mxu0 0.0
        %581 = vmatpush1.msra.mxu0 0.0
        %582 = vmatprep.subr.mxu0 0.0
        %583 = vmatpush1.msra.mxu0 0.0
        %584 = vmatprep.subr.mxu0 0.0
        %585 = vmatpush1.msra.mxu0 0.0
        %586 = vmatprep.mubr.f32.mxu0 0.0
        %587 = vmatmul.mubr.f32.gmra.mrb[0].mxu0 %v272
        %v588 = vpop.f32.mrb[0].mxu0
        %v589 = vadd.f32 %v268, %v588
        %v590 = vpop.f32.mrb[0].mxu0
        %v591 = vadd.f32 %v268, %v590
        %592 = vdwg.mxu0
        %v593 = vmax.f32 %v589, 0.0
        %v594 = vmax.f32 %v591, 0.0
        %v595 = vmax.f32 %v511, %v593
        %v596 = vmax.f32 %v512, %v594
        %v597 = vmax.f32 %v429, %v595
        %v598 = vmax.f32 %v430, %v596
        %v601 = vcombine.low %v597, %v598
        %603 = vst [vmem:[%s253] sm:$0xff] %v601
        %s604 = smul.u32 2, %s14
        %p605 = scmp.lt.s32.totalorder %s604, 3
        %s606 = scalar_select %p605, %s604, 3
        %s607 = smul.addr %s606, 4
        %s608 = scalar_lea.vmem %s3, %s607
        // Predicated region
        $region56: #{cnn_forward.4} parent=50 // pred_check
          %p609 = pneg %p100
        $region57: #{cnn_forward.4} parent=50 // pred_check_branch
          %611 = sbr.rel (%p609) target = $region59
        $region58: #{cnn_forward.4} parent=50 // pred_region
          %s612 = smul.u32 2, %s14
        $region59: #{cnn_forward.4} parent=50 // pred_fallthru
          _
      $region51: #{cnn_forward.4} parent=5 // pred_fallthru
        _
      %p613 = scmp.le.s32.totalorder 2, %s9
      // Predicated region
      $region60: #{cnn_forward.4} parent=5 // pred_check
        %p614 = pneg %p613
      $region61: #{cnn_forward.4} parent=5 // pred_check_branch
        %616 = sbr.rel (%p614) target = $region63
      $region62: #{cnn_forward.4} parent=5 // pred_region
        %s617 = ssub.s32 %s9, 2
        // Predicated region
        $region64: #{cnn_forward.4} parent=62 // pred_check
          %p618 = pneg %p106
        $region65: #{cnn_forward.4} parent=62 // pred_check_branch
          %620 = sbr.rel (%p618) target = $region67
        $region66: #{cnn_forward.4} parent=62 // pred_region
          %s621 = smul.u32 2, %s15
          %p622 = scmp.lt.s32.totalorder %s621, 3
          %s623 = scalar_select %p622, %s621, 3
          %s624 = smul.addr %s623, 4
          %s625 = scalar_lea.vmem %s3, %s624
        $region67: #{cnn_forward.4} parent=62 // pred_fallthru
          _
      $region63: #{cnn_forward.4} parent=5 // pred_fallthru
        _
    $region6: #{cnn_forward.4} parent=1 // loop_footer
      %s13 = sadd.s32 1, %s9
    $region7: #{cnn_forward.4} parent=1 // loop_footer_branch
      %8 = sbr.rel target = $region3
    $region8: #{cnn_forward.4} parent=1 // loop_exit
      _

// kernel: cnn_forward.5
$region0: #{cnn_forward.5}
  #allocation0 [shape = 'u32[]', space=smem, size = 0x4, offset = 0x4, fixed_abs, tag = 'smem constant byte address 0x4 - core index']
  #allocation1 [shape = 'u32[144,128]{1,0:T(1,128)}', space=vmem, size = 0x12000, scoped, tag = 'internal scratch']
  %s0 = inlined_call_operand.vmem [shape: f32[4,40,32], index: 0, kind: input, shape index: {}]
  %s1 = inlined_call_operand.vmem [shape: f32[8,40], index: 1, kind: input, shape index: {}]
  %s2 = inlined_call_operand.vmem [shape: f32[8,1], index: 2, kind: input, shape index: {}]
  %s3 = inlined_call_operand.vmem [shape: f32[8,32], index: 3, kind: output, shape index: {}]
  %s4 = sld [smem:[#allocation0]]
  $region22: #{cnn_forward.5} parent=0
    _
  %s6 = ssub.s32 1, %s4
  %s7 = scalar_select 0, %s6, %s4
  // Predicated region
  $region2: #{cnn_forward.5} parent=0 // pred_check
    _
  $region3: #{cnn_forward.5} parent=0 // pred_check_branch
    %9 = sbr.rel (0) target = $region5
  $region4: #{cnn_forward.5} parent=0 // pred_region
    _
  $region5: #{cnn_forward.5} parent=0 // pred_fallthru
    _
  // Predicated region
  $region6: #{cnn_forward.5} parent=0 // pred_check
    _
  $region7: #{cnn_forward.5} parent=0 // pred_check_branch
    %11 = sbr.rel (0) target = $region9
  $region8: #{cnn_forward.5} parent=0 // pred_region
    _
  $region9: #{cnn_forward.5} parent=0 // pred_fallthru
    _
  // Predicated region
  $region10: #{cnn_forward.5} parent=0 // pred_check
    _
  $region11: #{cnn_forward.5} parent=0 // pred_check_branch
    %13 = sbr.rel (0) target = $region13
  $region12: #{cnn_forward.5} parent=0 // pred_region
    _
  $region13: #{cnn_forward.5} parent=0 // pred_fallthru
    _
  %v14 = vld [vmem:[%s1] sm:$0xff]
  %v15 = vld [vmem:[%s2] sm:$0xff]
  %v16 = vld [vmem:[%s0] sm:$0xff]
  %v17 = vld [vmem:[%s0 + $0x8] sm:$0xff]
  %v18 = vld [vmem:[%s0 + $0x10] sm:$0xff]
  %v19 = vld [vmem:[%s0 + $0x18] sm:$0xff]
  %v20 = vld [vmem:[%s0 + $0x20] sm:$0xff]
  %22 = vset.pattern.permute.xlu0 0
  %23 = vperm.xlu0 %22, %v15
  %v24 = vpop.permute.xlu0 %23
  %vm26 = vcmask 326656
  %v28 = vsel %vm26, %v14, 0
  %30 = vmatprep.subr.mxu0 0.0
  %31 = vmatpush1.msra.mxu0 %v16
  %32 = vmatprep.subr.mxu0 0.0
  %33 = vmatpush1.msra.mxu0 %v17
  %34 = vmatprep.subr.mxu0 0.0
  %35 = vmatpush1.msra.mxu0 %v18
  %36 = vmatprep.subr.mxu0 0.0
  %37 = vmatpush1.msra.mxu0 %v19
  %38 = vmatprep.subr.mxu0 0.0
  %39 = vmatpush1.msra.mxu0 %v20
  %40 = vmatprep.subr.mxu0 0.0
  %41 = vmatpush1.msra.mxu0 0.0
  %42 = vmatprep.subr.mxu0 0.0
  %43 = vmatpush1.msra.mxu0 0.0
  %44 = vmatprep.subr.mxu0 0.0
  %45 = vmatpush1.msra.mxu0 0.0
  %46 = vmatprep.subr.mxu0 0.0
  %47 = vmatpush1.msra.mxu0 0.0
  %48 = vmatprep.subr.mxu0 0.0
  %49 = vmatpush1.msra.mxu0 0.0
  %50 = vmatprep.subr.mxu0 0.0
  %51 = vmatpush1.msra.mxu0 0.0
  %52 = vmatprep.subr.mxu0 0.0
  %53 = vmatpush1.msra.mxu0 0.0
  %54 = vmatprep.subr.mxu0 0.0
  %55 = vmatpush1.msra.mxu0 0.0
  %56 = vmatprep.subr.mxu0 0.0
  %57 = vmatpush1.msra.mxu0 0.0
  %58 = vmatprep.subr.mxu0 0.0
  %59 = vmatpush1.msra.mxu0 0.0
  %60 = vmatprep.subr.mxu0 0.0
  %61 = vmatpush1.msra.mxu0 0.0
  %62 = vmatprep.subr.mxu0 0.0
  %63 = vmatpush1.msra.mxu0 0.0
  %64 = vmatprep.subr.mxu0 0.0
  %65 = vmatpush1.msra.mxu0 0.0
  %66 = vmatprep.subr.mxu0 0.0
  %67 = vmatpush1.msra.mxu0 0.0
  %68 = vmatprep.subr.mxu0 0.0
  %69 = vmatpush1.msra.mxu0 0.0
  %70 = vmatprep.subr.mxu0 0.0
  %71 = vmatpush1.msra.mxu0 0.0
  %72 = vmatprep.subr.mxu0 0.0
  %73 = vmatpush1.msra.mxu0 0.0
  %74 = vmatprep.subr.mxu0 0.0
  %75 = vmatpush1.msra.mxu0 0.0
  %76 = vmatprep.subr.mxu0 0.0
  %77 = vmatpush1.msra.mxu0 0.0
  %78 = vmatprep.subr.mxu0 0.0
  %79 = vmatpush1.msra.mxu0 0.0
  %80 = vmatprep.subr.mxu0 0.0
  %81 = vmatpush1.msra.mxu0 0.0
  %82 = vmatprep.subr.mxu0 0.0
  %83 = vmatpush1.msra.mxu0 0.0
  %84 = vmatprep.subr.mxu0 0.0
  %85 = vmatpush1.msra.mxu0 0.0
  %86 = vmatprep.subr.mxu0 0.0
  %87 = vmatpush1.msra.mxu0 0.0
  %88 = vmatprep.subr.mxu0 0.0
  %89 = vmatpush1.msra.mxu0 0.0
  %90 = vmatprep.subr.mxu0 0.0
  %91 = vmatpush1.msra.mxu0 0.0
  %92 = vmatprep.subr.mxu0 0.0
  %93 = vmatpush1.msra.mxu0 0.0
  %94 = vmatprep.mubr.f32.mxu0 0.0
  %95 = vmatmul.mubr.f32.gmra.mrb[0].mxu0 %v28
  %v96 = vpop.f32.mrb[0].mxu0
  %v97 = vadd.f32 %v24, %v96
  %v98 = vpop.f32.mrb[0].mxu0
  %99 = vdwg.mxu0
  %v100 = vmax.f32 %v97, 0.0
  %s101 = scalar_lea.vmem %s0, 40
  %v102 = vld [vmem:[%s101] sm:$0xff]
  %v103 = vld [vmem:[%s101 + $0x8] sm:$0xff]
  %v104 = vld [vmem:[%s101 + $0x10] sm:$0xff]
  %v105 = vld [vmem:[%s101 + $0x18] sm:$0xff]
  %v106 = vld [vmem:[%s101 + $0x20] sm:$0xff]
  %107 = vmatprep.subr.mxu0 0.0
  %108 = vmatpush1.msra.mxu0 %v102
  %109 = vmatprep.subr.mxu0 0.0
  %110 = vmatpush1.msra.mxu0 %v103
  %111 = vmatprep.subr.mxu0 0.0
  %112 = vmatpush1.msra.mxu0 %v104
  %113 = vmatprep.subr.mxu0 0.0
  %114 = vmatpush1.msra.mxu0 %v105
  %115 = vmatprep.subr.mxu0 0.0
  %116 = vmatpush1.msra.mxu0 %v106
  %117 = vmatprep.subr.mxu0 0.0
  %118 = vmatpush1.msra.mxu0 0.0
  %119 = vmatprep.subr.mxu0 0.0
  %120 = vmatpush1.msra.mxu0 0.0
  %121 = vmatprep.subr.mxu0 0.0
  %122 = vmatpush1.msra.mxu0 0.0
  %123 = vmatprep.subr.mxu0 0.0
  %124 = vmatpush1.msra.mxu0 0.0
  %125 = vmatprep.subr.mxu0 0.0
  %126 = vmatpush1.msra.mxu0 0.0
  %127 = vmatprep.subr.mxu0 0.0
  %128 = vmatpush1.msra.mxu0 0.0
  %129 = vmatprep.subr.mxu0 0.0
  %130 = vmatpush1.msra.mxu0 0.0
  %131 = vmatprep.subr.mxu0 0.0
  %132 = vmatpush1.msra.mxu0 0.0
  %133 = vmatprep.subr.mxu0 0.0
  %134 = vmatpush1.msra.mxu0 0.0
  %135 = vmatprep.subr.mxu0 0.0
  %136 = vmatpush1.msra.mxu0 0.0
  %137 = vmatprep.subr.mxu0 0.0
  %138 = vmatpush1.msra.mxu0 0.0
  %139 = vmatprep.subr.mxu0 0.0
  %140 = vmatpush1.msra.mxu0 0.0
  %141 = vmatprep.subr.mxu0 0.0
  %142 = vmatpush1.msra.mxu0 0.0
  %143 = vmatprep.subr.mxu0 0.0
  %144 = vmatpush1.msra.mxu0 0.0
  %145 = vmatprep.subr.mxu0 0.0
  %146 = vmatpush1.msra.mxu0 0.0
  %147 = vmatprep.subr.mxu0 0.0
  %148 = vmatpush1.msra.mxu0 0.0
  %149 = vmatprep.subr.mxu0 0.0
  %150 = vmatpush1.msra.mxu0 0.0
  %151 = vmatprep.subr.mxu0 0.0
  %152 = vmatpush1.msra.mxu0 0.0
  %153 = vmatprep.subr.mxu0 0.0
  %154 = vmatpush1.msra.mxu0 0.0
  %155 = vmatprep.subr.mxu0 0.0
  %156 = vmatpush1.msra.mxu0 0.0
  %157 = vmatprep.subr.mxu0 0.0
  %158 = vmatpush1.msra.mxu0 0.0
  %159 = vmatprep.subr.mxu0 0.0
  %160 = vmatpush1.msra.mxu0 0.0
  %161 = vmatprep.subr.mxu0 0.0
  %162 = vmatpush1.msra.mxu0 0.0
  %163 = vmatprep.subr.mxu0 0.0
  %164 = vmatpush1.msra.mxu0 0.0
  %165 = vmatprep.subr.mxu0 0.0
  %166 = vmatpush1.msra.mxu0 0.0
  %167 = vmatprep.subr.mxu0 0.0
  %168 = vmatpush1.msra.mxu0 0.0
  %169 = vmatprep.subr.mxu0 0.0
  %170 = vmatpush1.msra.mxu0 0.0
  %171 = vmatprep.mubr.f32.mxu0 0.0
  %172 = vmatmul.mubr.f32.gmra.mrb[0].mxu0 %v28
  %v173 = vpop.f32.mrb[0].mxu0
  %v174 = vadd.f32 %v24, %v173
  %v175 = vpop.f32.mrb[0].mxu0
  %176 = vdwg.mxu0
  %v177 = vmax.f32 %v174, 0.0
  %v178 = vmax.f32 %v100, %v177
  %s179 = scalar_lea.vmem %s0, 80
  %v180 = vld [vmem:[%s179] sm:$0xff]
  %v181 = vld [vmem:[%s179 + $0x8] sm:$0xff]
  %v182 = vld [vmem:[%s179 + $0x10] sm:$0xff]
  %v183 = vld [vmem:[%s179 + $0x18] sm:$0xff]
  %v184 = vld [vmem:[%s179 + $0x20] sm:$0xff]
  %185 = vmatprep.subr.mxu0 0.0
  %186 = vmatpush1.msra.mxu0 %v180
  %187 = vmatprep.subr.mxu0 0.0
  %188 = vmatpush1.msra.mxu0 %v181
  %189 = vmatprep.subr.mxu0 0.0
  %190 = vmatpush1.msra.mxu0 %v182
  %191 = vmatprep.subr.mxu0 0.0
  %192 = vmatpush1.msra.mxu0 %v183
  %193 = vmatprep.subr.mxu0 0.0
  %194 = vmatpush1.msra.mxu0 %v184
  %195 = vmatprep.subr.mxu0 0.0
  %196 = vmatpush1.msra.mxu0 0.0
  %197 = vmatprep.subr.mxu0 0.0
  %198 = vmatpush1.msra.mxu0 0.0
  %199 = vmatprep.subr.mxu0 0.0
  %200 = vmatpush1.msra.mxu0 0.0
  %201 = vmatprep.subr.mxu0 0.0
  %202 = vmatpush1.msra.mxu0 0.0
  %203 = vmatprep.subr.mxu0 0.0
  %204 = vmatpush1.msra.mxu0 0.0
  %205 = vmatprep.subr.mxu0 0.0
  %206 = vmatpush1.msra.mxu0 0.0
  %207 = vmatprep.subr.mxu0 0.0
  %208 = vmatpush1.msra.mxu0 0.0
  %209 = vmatprep.subr.mxu0 0.0
  %210 = vmatpush1.msra.mxu0 0.0
  %211 = vmatprep.subr.mxu0 0.0
  %212 = vmatpush1.msra.mxu0 0.0
  %213 = vmatprep.subr.mxu0 0.0
  %214 = vmatpush1.msra.mxu0 0.0
  %215 = vmatprep.subr.mxu0 0.0
  %216 = vmatpush1.msra.mxu0 0.0
  %217 = vmatprep.subr.mxu0 0.0
  %218 = vmatpush1.msra.mxu0 0.0
  %219 = vmatprep.subr.mxu0 0.0
  %220 = vmatpush1.msra.mxu0 0.0
  %221 = vmatprep.subr.mxu0 0.0
  %222 = vmatpush1.msra.mxu0 0.0
  %223 = vmatprep.subr.mxu0 0.0
  %224 = vmatpush1.msra.mxu0 0.0
  %225 = vmatprep.subr.mxu0 0.0
  %226 = vmatpush1.msra.mxu0 0.0
  %227 = vmatprep.subr.mxu0 0.0
  %228 = vmatpush1.msra.mxu0 0.0
  %229 = vmatprep.subr.mxu0 0.0
  %230 = vmatpush1.msra.mxu0 0.0
  %231 = vmatprep.subr.mxu0 0.0
  %232 = vmatpush1.msra.mxu0 0.0
  %233 = vmatprep.subr.mxu0 0.0
  %234 = vmatpush1.msra.mxu0 0.0
  %235 = vmatprep.subr.mxu0 0.0
  %236 = vmatpush1.msra.mxu0 0.0
  %237 = vmatprep.subr.mxu0 0.0
  %238 = vmatpush1.msra.mxu0 0.0
  %239 = vmatprep.subr.mxu0 0.0
  %240 = vmatpush1.msra.mxu0 0.0
  %241 = vmatprep.subr.mxu0 0.0
  %242 = vmatpush1.msra.mxu0 0.0
  %243 = vmatprep.subr.mxu0 0.0
  %244 = vmatpush1.msra.mxu0 0.0
  %245 = vmatprep.subr.mxu0 0.0
  %246 = vmatpush1.msra.mxu0 0.0
  %247 = vmatprep.subr.mxu0 0.0
  %248 = vmatpush1.msra.mxu0 0.0
  %249 = vmatprep.mubr.f32.mxu0 0.0
  %250 = vmatmul.mubr.f32.gmra.mrb[0].mxu0 %v28
  %v251 = vpop.f32.mrb[0].mxu0
  %v252 = vadd.f32 %v24, %v251
  %v253 = vpop.f32.mrb[0].mxu0
  %254 = vdwg.mxu0
  %v255 = vmax.f32 %v252, 0.0
  %s256 = scalar_lea.vmem %s0, 120
  %v257 = vld [vmem:[%s256] sm:$0xff]
  %v258 = vld [vmem:[%s256 + $0x8] sm:$0xff]
  %v259 = vld [vmem:[%s256 + $0x10] sm:$0xff]
  %v260 = vld [vmem:[%s256 + $0x18] sm:$0xff]
  %v261 = vld [vmem:[%s256 + $0x20] sm:$0xff]
  %262 = vmatprep.subr.mxu0 0.0
  %263 = vmatpush1.msra.mxu0 %v257
  %264 = vmatprep.subr.mxu0 0.0
  %265 = vmatpush1.msra.mxu0 %v258
  %266 = vmatprep.subr.mxu0 0.0
  %267 = vmatpush1.msra.mxu0 %v259
  %268 = vmatprep.subr.mxu0 0.0
  %269 = vmatpush1.msra.mxu0 %v260
  %270 = vmatprep.subr.mxu0 0.0
  %271 = vmatpush1.msra.mxu0 %v261
  %272 = vmatprep.subr.mxu0 0.0
  %273 = vmatpush1.msra.mxu0 0.0
  %274 = vmatprep.subr.mxu0 0.0
  %275 = vmatpush1.msra.mxu0 0.0
  %276 = vmatprep.subr.mxu0 0.0
  %277 = vmatpush1.msra.mxu0 0.0
  %278 = vmatprep.subr.mxu0 0.0
  %279 = vmatpush1.msra.mxu0 0.0
  %280 = vmatprep.subr.mxu0 0.0
  %281 = vmatpush1.msra.mxu0 0.0
  %282 = vmatprep.subr.mxu0 0.0
  %283 = vmatpush1.msra.mxu0 0.0
  %284 = vmatprep.subr.mxu0 0.0
  %285 = vmatpush1.msra.mxu0 0.0
  %286 = vmatprep.subr.mxu0 0.0
  %287 = vmatpush1.msra.mxu0 0.0
  %288 = vmatprep.subr.mxu0 0.0
  %289 = vmatpush1.msra.mxu0 0.0
  %290 = vmatprep.subr.mxu0 0.0
  %291 = vmatpush1.msra.mxu0 0.0
  %292 = vmatprep.subr.mxu0 0.0
  %293 = vmatpush1.msra.mxu0 0.0
  %294 = vmatprep.subr.mxu0 0.0
  %295 = vmatpush1.msra.mxu0 0.0
  %296 = vmatprep.subr.mxu0 0.0
  %297 = vmatpush1.msra.mxu0 0.0
  %298 = vmatprep.subr.mxu0 0.0
  %299 = vmatpush1.msra.mxu0 0.0
  %300 = vmatprep.subr.mxu0 0.0
  %301 = vmatpush1.msra.mxu0 0.0
  %302 = vmatprep.subr.mxu0 0.0
  %303 = vmatpush1.msra.mxu0 0.0
  %304 = vmatprep.subr.mxu0 0.0
  %305 = vmatpush1.msra.mxu0 0.0
  %306 = vmatprep.subr.mxu0 0.0
  %307 = vmatpush1.msra.mxu0 0.0
  %308 = vmatprep.subr.mxu0 0.0
  %309 = vmatpush1.msra.mxu0 0.0
  %310 = vmatprep.subr.mxu0 0.0
  %311 = vmatpush1.msra.mxu0 0.0
  %312 = vmatprep.subr.mxu0 0.0
  %313 = vmatpush1.msra.mxu0 0.0
  %314 = vmatprep.subr.mxu0 0.0
  %315 = vmatpush1.msra.mxu0 0.0
  %316 = vmatprep.subr.mxu0 0.0
  %317 = vmatpush1.msra.mxu0 0.0
  %318 = vmatprep.subr.mxu0 0.0
  %319 = vmatpush1.msra.mxu0 0.0
  %320 = vmatprep.subr.mxu0 0.0
  %321 = vmatpush1.msra.mxu0 0.0
  %322 = vmatprep.subr.mxu0 0.0
  %323 = vmatpush1.msra.mxu0 0.0
  %324 = vmatprep.subr.mxu0 0.0
  %325 = vmatpush1.msra.mxu0 0.0
  %326 = vmatprep.mubr.f32.mxu0 0.0
  %327 = vmatmul.mubr.f32.gmra.mrb[0].mxu0 %v28
  %v328 = vpop.f32.mrb[0].mxu0
  %v329 = vadd.f32 %v24, %v328
  %v330 = vpop.f32.mrb[0].mxu0
  %331 = vdwg.mxu0
  %v332 = vmax.f32 %v329, 0.0
  %v333 = vmax.f32 %v255, %v332
  %v334 = vmax.f32 %v178, %v333
  %vm335 = vcmask 261120
  %336 = vst.msk [vmem:[%s3] sm:$0xff] %vm335, %v334
  // Predicated region
  $region14: #{cnn_forward.5} parent=0 // pred_check
    _
  $region15: #{cnn_forward.5} parent=0 // pred_check_branch
    %338 = sbr.rel (0) target = $region17
  $region16: #{cnn_forward.5} parent=0 // pred_region
    _
  $region17: #{cnn_forward.5} parent=0 // pred_fallthru
    _
  // Predicated region
  $region18: #{cnn_forward.5} parent=0 // pred_check
    _
  $region19: #{cnn_forward.5} parent=0 // pred_check_branch
    %340 = sbr.rel (0) target = $region21
  $region20: #{cnn_forward.5} parent=0 // pred_region
    _
  $region21: #{cnn_forward.5} parent=0 // pred_fallthru
    _

// kernel: cnn_forward.6
$region0: #{cnn_forward.6}
  #allocation0 [shape = 'u32[]', space=smem, size = 0x4, offset = 0x4, fixed_abs, tag = 'smem constant byte address 0x4 - core index']
  #allocation1 [shape = 'u32[144,128]{1,0:T(1,128)}', space=vmem, size = 0x12000, scoped, tag = 'internal scratch']
  %s0 = inlined_call_operand.vmem [shape: f32[4,72,2], index: 0, kind: input, shape index: {}]
  %s1 = inlined_call_operand.vmem [shape: f32[12,72], index: 1, kind: input, shape index: {}]
  %s2 = inlined_call_operand.vmem [shape: f32[12,1], index: 2, kind: input, shape index: {}]
  %s3 = inlined_call_operand.vmem [shape: f32[12,2], index: 3, kind: output, shape index: {}]
  %s4 = sld [smem:[#allocation0]]
  $region22: #{cnn_forward.6} parent=0
    _
  %s6 = ssub.s32 1, %s4
  %s7 = scalar_select 0, %s6, %s4
  // Predicated region
  $region2: #{cnn_forward.6} parent=0 // pred_check
    _
  $region3: #{cnn_forward.6} parent=0 // pred_check_branch
    %9 = sbr.rel (0) target = $region5
  $region4: #{cnn_forward.6} parent=0 // pred_region
    _
  $region5: #{cnn_forward.6} parent=0 // pred_fallthru
    _
  // Predicated region
  $region6: #{cnn_forward.6} parent=0 // pred_check
    _
  $region7: #{cnn_forward.6} parent=0 // pred_check_branch
    %11 = sbr.rel (0) target = $region9
  $region8: #{cnn_forward.6} parent=0 // pred_region
    _
  $region9: #{cnn_forward.6} parent=0 // pred_fallthru
    _
  // Predicated region
  $region10: #{cnn_forward.6} parent=0 // pred_check
    _
  $region11: #{cnn_forward.6} parent=0 // pred_check_branch
    %13 = sbr.rel (0) target = $region13
  $region12: #{cnn_forward.6} parent=0 // pred_region
    _
  $region13: #{cnn_forward.6} parent=0 // pred_fallthru
    _
  %v14 = vld [vmem:[%s1] sm:$0xff]
  %v15 = vld [vmem:[%s1 + $0x8] sm:$0xf]
  %v16 = vld [vmem:[%s2] sm:$0xff]
  %v17 = vld [vmem:[%s2 + $0x8] sm:$0xf]
  %v18 = vld [vmem:[%s0] sm:$0xff]
  %v19 = vld [vmem:[%s0 + $0x8] sm:$0xff]
  %v20 = vld [vmem:[%s0 + $0x10] sm:$0xff]
  %v21 = vld [vmem:[%s0 + $0x18] sm:$0xff]
  %v22 = vld [vmem:[%s0 + $0x20] sm:$0xff]
  %v23 = vld [vmem:[%s0 + $0x28] sm:$0xff]
  %v24 = vld [vmem:[%s0 + $0x30] sm:$0xff]
  %v25 = vld [vmem:[%s0 + $0x38] sm:$0xff]
  %v26 = vld [vmem:[%s0 + $0x40] sm:$0xff]
  %28 = vset.pattern.permute.xlu0 0
  %29 = vperm.xlu0 %28, %v16
  %v30 = vpop.permute.xlu0 %29
  %33 = vset.pattern.permute.xlu0 0
  %34 = vperm.xlu0 %33, %v17
  %v35 = vpop.permute.xlu0 %34
  %vm37 = vcmask 588800
  %v39 = vsel %vm37, %v14, 0
  %v42 = vsel %vm37, %v15, 0
  %44 = vmatprep.subr.mxu0 0.0
  %45 = vmatpush1.msra.mxu0 %v18
  %46 = vmatprep.subr.mxu0 0.0
  %47 = vmatpush1.msra.mxu0 %v19
  %48 = vmatprep.subr.mxu0 0.0
  %49 = vmatpush1.msra.mxu0 %v20
  %50 = vmatprep.subr.mxu0 0.0
  %51 = vmatpush1.msra.mxu0 %v21
  %52 = vmatprep.subr.mxu0 0.0
  %53 = vmatpush1.msra.mxu0 %v22
  %54 = vmatprep.subr.mxu0 0.0
  %55 = vmatpush1.msra.mxu0 %v23
  %56 = vmatprep.subr.mxu0 0.0
  %57 = vmatpush1.msra.mxu0 %v24
  %58 = vmatprep.subr.mxu0 0.0
  %59 = vmatpush1.msra.mxu0 %v25
  %60 = vmatprep.subr.mxu0 0.0
  %61 = vmatpush1.msra.mxu0 %v26
  %62 = vmatprep.subr.mxu0 0.0
  %63 = vmatpush1.msra.mxu0 0.0
  %64 = vmatprep.subr.mxu0 0.0
  %65 = vmatpush1.msra.mxu0 0.0
  %66 = vmatprep.subr.mxu0 0.0
  %67 = vmatpush1.msra.mxu0 0.0
  %68 = vmatprep.subr.mxu0 0.0
  %69 = vmatpush1.msra.mxu0 0.0
  %70 = vmatprep.subr.mxu0 0.0
  %71 = vmatpush1.msra.mxu0 0.0
  %72 = vmatprep.subr.mxu0 0.0
  %73 = vmatpush1.msra.mxu0 0.0
  %74 = vmatprep.subr.mxu0 0.0
  %75 = vmatpush1.msra.mxu0 0.0
  %76 = vmatprep.subr.mxu0 0.0
  %77 = vmatpush1.msra.mxu0 0.0
  %78 = vmatprep.subr.mxu0 0.0
  %79 = vmatpush1.msra.mxu0 0.0
  %80 = vmatprep.subr.mxu0 0.0
  %81 = vmatpush1.msra.mxu0 0.0
  %82 = vmatprep.subr.mxu0 0.0
  %83 = vmatpush1.msra.mxu0 0.0
  %84 = vmatprep.subr.mxu0 0.0
  %85 = vmatpush1.msra.mxu0 0.0
  %86 = vmatprep.subr.mxu0 0.0
  %87 = vmatpush1.msra.mxu0 0.0
  %88 = vmatprep.subr.mxu0 0.0
  %89 = vmatpush1.msra.mxu0 0.0
  %90 = vmatprep.subr.mxu0 0.0
  %91 = vmatpush1.msra.mxu0 0.0
  %92 = vmatprep.subr.mxu0 0.0
  %93 = vmatpush1.msra.mxu0 0.0
  %94 = vmatprep.subr.mxu0 0.0
  %95 = vmatpush1.msra.mxu0 0.0
  %96 = vmatprep.subr.mxu0 0.0
  %97 = vmatpush1.msra.mxu0 0.0
  %98 = vmatprep.subr.mxu0 0.0
  %99 = vmatpush1.msra.mxu0 0.0
  %100 = vmatprep.subr.mxu0 0.0
  %101 = vmatpush1.msra.mxu0 0.0
  %102 = vmatprep.subr.mxu0 0.0
  %103 = vmatpush1.msra.mxu0 0.0
  %104 = vmatprep.subr.mxu0 0.0
  %105 = vmatpush1.msra.mxu0 0.0
  %106 = vmatprep.subr.mxu0 0.0
  %107 = vmatpush1.msra.mxu0 0.0
  %108 = vmatprep.mubr.f32.mxu0 0.0
  %109 = vmatmul.mubr.f32.gmra.mrb[0].mxu0 %v39
  %v110 = vpop.f32.mrb[0].mxu0
  %v111 = vadd.f32 %v30, %v110
  %v112 = vpop.f32.mrb[0].mxu0
  %113 = vmatprep.mubr.f32.mxu0 0.0
  %114 = vmatmul.mubr.f32.gmra.mrb[0].mxu0 %v42
  %v115 = vpop.f32.mrb[0].mxu0
  %v116 = vadd.f32 %v35, %v115
  %v117 = vpop.f32.mrb[0].mxu0
  %118 = vdwg.mxu0
  %v119 = vmax.f32 %v111, 0.0
  %v120 = vmax.f32 %v116, 0.0
  %s121 = scalar_lea.vmem %s0, 72
  %v122 = vld [vmem:[%s121] sm:$0xff]
  %v123 = vld [vmem:[%s121 + $0x8] sm:$0xff]
  %v124 = vld [vmem:[%s121 + $0x10] sm:$0xff]
  %v125 = vld [vmem:[%s121 + $0x18] sm:$0xff]
  %v126 = vld [vmem:[%s121 + $0x20] sm:$0xff]
  %v127 = vld [vmem:[%s121 + $0x28] sm:$0xff]
  %v128 = vld [vmem:[%s121 + $0x30] sm:$0xff]
  %v129 = vld [vmem:[%s121 + $0x38] sm:$0xff]
  %v130 = vld [vmem:[%s121 + $0x40] sm:$0xff]
  %131 = vmatprep.subr.mxu0 0.0
  %132 = vmatpush1.msra.mxu0 %v122
  %133 = vmatprep.subr.mxu0 0.0
  %134 = vmatpush1.msra.mxu0 %v123
  %135 = vmatprep.subr.mxu0 0.0
  %136 = vmatpush1.msra.mxu0 %v124
  %137 = vmatprep.subr.mxu0 0.0
  %138 = vmatpush1.msra.mxu0 %v125
  %139 = vmatprep.subr.mxu0 0.0
  %140 = vmatpush1.msra.mxu0 %v126
  %141 = vmatprep.subr.mxu0 0.0
  %142 = vmatpush1.msra.mxu0 %v127
  %143 = vmatprep.subr.mxu0 0.0
  %144 = vmatpush1.msra.mxu0 %v128
  %145 = vmatprep.subr.mxu0 0.0
  %146 = vmatpush1.msra.mxu0 %v129
  %147 = vmatprep.subr.mxu0 0.0
  %148 = vmatpush1.msra.mxu0 %v130
  %149 = vmatprep.subr.mxu0 0.0
  %150 = vmatpush1.msra.mxu0 0.0
  %151 = vmatprep.subr.mxu0 0.0
  %152 = vmatpush1.msra.mxu0 0.0
  %153 = vmatprep.subr.mxu0 0.0
  %154 = vmatpush1.msra.mxu0 0.0
  %155 = vmatprep.subr.mxu0 0.0
  %156 = vmatpush1.msra.mxu0 0.0
  %157 = vmatprep.subr.mxu0 0.0
  %158 = vmatpush1.msra.mxu0 0.0
  %159 = vmatprep.subr.mxu0 0.0
  %160 = vmatpush1.msra.mxu0 0.0
  %161 = vmatprep.subr.mxu0 0.0
  %162 = vmatpush1.msra.mxu0 0.0
  %163 = vmatprep.subr.mxu0 0.0
  %164 = vmatpush1.msra.mxu0 0.0
  %165 = vmatprep.subr.mxu0 0.0
  %166 = vmatpush1.msra.mxu0 0.0
  %167 = vmatprep.subr.mxu0 0.0
  %168 = vmatpush1.msra.mxu0 0.0
  %169 = vmatprep.subr.mxu0 0.0
  %170 = vmatpush1.msra.mxu0 0.0
  %171 = vmatprep.subr.mxu0 0.0
  %172 = vmatpush1.msra.mxu0 0.0
  %173 = vmatprep.subr.mxu0 0.0
  %174 = vmatpush1.msra.mxu0 0.0
  %175 = vmatprep.subr.mxu0 0.0
  %176 = vmatpush1.msra.mxu0 0.0
  %177 = vmatprep.subr.mxu0 0.0
  %178 = vmatpush1.msra.mxu0 0.0
  %179 = vmatprep.subr.mxu0 0.0
  %180 = vmatpush1.msra.mxu0 0.0
  %181 = vmatprep.subr.mxu0 0.0
  %182 = vmatpush1.msra.mxu0 0.0
  %183 = vmatprep.subr.mxu0 0.0
  %184 = vmatpush1.msra.mxu0 0.0
  %185 = vmatprep.subr.mxu0 0.0
  %186 = vmatpush1.msra.mxu0 0.0
  %187 = vmatprep.subr.mxu0 0.0
  %188 = vmatpush1.msra.mxu0 0.0
  %189 = vmatprep.subr.mxu0 0.0
  %190 = vmatpush1.msra.mxu0 0.0
  %191 = vmatprep.subr.mxu0 0.0
  %192 = vmatpush1.msra.mxu0 0.0
  %193 = vmatprep.subr.mxu0 0.0
  %194 = vmatpush1.msra.mxu0 0.0
  %195 = vmatprep.mubr.f32.mxu0 0.0
  %196 = vmatmul.mubr.f32.gmra.mrb[0].mxu0 %v39
  %v197 = vpop.f32.mrb[0].mxu0
  %v198 = vadd.f32 %v30, %v197
  %v199 = vpop.f32.mrb[0].mxu0
  %200 = vmatprep.mubr.f32.mxu0 0.0
  %201 = vmatmul.mubr.f32.gmra.mrb[0].mxu0 %v42
  %v202 = vpop.f32.mrb[0].mxu0
  %v203 = vadd.f32 %v35, %v202
  %v204 = vpop.f32.mrb[0].mxu0
  %205 = vdwg.mxu0
  %v206 = vmax.f32 %v198, 0.0
  %v207 = vmax.f32 %v203, 0.0
  %v208 = vmax.f32 %v119, %v206
  %v209 = vmax.f32 %v120, %v207
  %s210 = scalar_lea.vmem %s0, 144
  %v211 = vld [vmem:[%s210] sm:$0xff]
  %v212 = vld [vmem:[%s210 + $0x8] sm:$0xff]
  %v213 = vld [vmem:[%s210 + $0x10] sm:$0xff]
  %v214 = vld [vmem:[%s210 + $0x18] sm:$0xff]
  %v215 = vld [vmem:[%s210 + $0x20] sm:$0xff]
  %v216 = vld [vmem:[%s210 + $0x28] sm:$0xff]
  %v217 = vld [vmem:[%s210 + $0x30] sm:$0xff]
  %v218 = vld [vmem:[%s210 + $0x38] sm:$0xff]
  %v219 = vld [vmem:[%s210 + $0x40] sm:$0xff]
  %220 = vmatprep.subr.mxu0 0.0
  %221 = vmatpush1.msra.mxu0 %v211
  %222 = vmatprep.subr.mxu0 0.0
  %223 = vmatpush1.msra.mxu0 %v212
  %224 = vmatprep.subr.mxu0 0.0
  %225 = vmatpush1.msra.mxu0 %v213
  %226 = vmatprep.subr.mxu0 0.0
  %227 = vmatpush1.msra.mxu0 %v214
  %228 = vmatprep.subr.mxu0 0.0
  %229 = vmatpush1.msra.mxu0 %v215
  %230 = vmatprep.subr.mxu0 0.0
  %231 = vmatpush1.msra.mxu0 %v216
  %232 = vmatprep.subr.mxu0 0.0
  %233 = vmatpush1.msra.mxu0 %v217
  %234 = vmatprep.subr.mxu0 0.0
  %235 = vmatpush1.msra.mxu0 %v218
  %236 = vmatprep.subr.mxu0 0.0
  %237 = vmatpush1.msra.mxu0 %v219
  %238 = vmatprep.subr.mxu0 0.0
  %239 = vmatpush1.msra.mxu0 0.0
  %240 = vmatprep.subr.mxu0 0.0
  %241 = vmatpush1.msra.mxu0 0.0
  %242 = vmatprep.subr.mxu0 0.0
  %243 = vmatpush1.msra.mxu0 0.0
  %244 = vmatprep.subr.mxu0 0.0
  %245 = vmatpush1.msra.mxu0 0.0
  %246 = vmatprep.subr.mxu0 0.0
  %247 = vmatpush1.msra.mxu0 0.0
  %248 = vmatprep.subr.mxu0 0.0
  %249 = vmatpush1.msra.mxu0 0.0
  %250 = vmatprep.subr.mxu0 0.0
  %251 = vmatpush1.msra.mxu0 0.0
  %252 = vmatprep.subr.mxu0 0.0
  %253 = vmatpush1.msra.mxu0 0.0
  %254 = vmatprep.subr.mxu0 0.0
  %255 = vmatpush1.msra.mxu0 0.0
  %256 = vmatprep.subr.mxu0 0.0
  %257 = vmatpush1.msra.mxu0 0.0
  %258 = vmatprep.subr.mxu0 0.0
  %259 = vmatpush1.msra.mxu0 0.0
  %260 = vmatprep.subr.mxu0 0.0
  %261 = vmatpush1.msra.mxu0 0.0
  %262 = vmatprep.subr.mxu0 0.0
  %263 = vmatpush1.msra.mxu0 0.0
  %264 = vmatprep.subr.mxu0 0.0
  %265 = vmatpush1.msra.mxu0 0.0
  %266 = vmatprep.subr.mxu0 0.0
  %267 = vmatpush1.msra.mxu0 0.0
  %268 = vmatprep.subr.mxu0 0.0
  %269 = vmatpush1.msra.mxu0 0.0
  %270 = vmatprep.subr.mxu0 0.0
  %271 = vmatpush1.msra.mxu0 0.0
  %272 = vmatprep.subr.mxu0 0.0
  %273 = vmatpush1.msra.mxu0 0.0
  %274 = vmatprep.subr.mxu0 0.0
  %275 = vmatpush1.msra.mxu0 0.0
  %276 = vmatprep.subr.mxu0 0.0
  %277 = vmatpush1.msra.mxu0 0.0
  %278 = vmatprep.subr.mxu0 0.0
  %279 = vmatpush1.msra.mxu0 0.0
  %280 = vmatprep.subr.mxu0 0.0
  %281 = vmatpush1.msra.mxu0 0.0
  %282 = vmatprep.subr.mxu0 0.0
  %283 = vmatpush1.msra.mxu0 0.0
  %284 = vmatprep.mubr.f32.mxu0 0.0
  %285 = vmatmul.mubr.f32.gmra.mrb[0].mxu0 %v39
  %v286 = vpop.f32.mrb[0].mxu0
  %v287 = vadd.f32 %v30, %v286
  %v288 = vpop.f32.mrb[0].mxu0
  %289 = vmatprep.mubr.f32.mxu0 0.0
  %290 = vmatmul.mubr.f32.gmra.mrb[0].mxu0 %v42
  %v291 = vpop.f32.mrb[0].mxu0
  %v292 = vadd.f32 %v35, %v291
  %v293 = vpop.f32.mrb[0].mxu0
  %294 = vdwg.mxu0
  %v295 = vmax.f32 %v287, 0.0
  %v296 = vmax.f32 %v292, 0.0
  %s297 = scalar_lea.vmem %s0, 216
  %v298 = vld [vmem:[%s297] sm:$0xff]
  %v299 = vld [vmem:[%s297 + $0x8] sm:$0xff]
  %v300 = vld [vmem:[%s297 + $0x10] sm:$0xff]
  %v301 = vld [vmem:[%s297 + $0x18] sm:$0xff]
  %v302 = vld [vmem:[%s297 + $0x20] sm:$0xff]
  %v303 = vld [vmem:[%s297 + $0x28] sm:$0xff]
  %v304 = vld [vmem:[%s297 + $0x30] sm:$0xff]
  %v305 = vld [vmem:[%s297 + $0x38] sm:$0xff]
  %v306 = vld [vmem:[%s297 + $0x40] sm:$0xff]
  %307 = vmatprep.subr.mxu0 0.0
  %308 = vmatpush1.msra.mxu0 %v298
  %309 = vmatprep.subr.mxu0 0.0
  %310 = vmatpush1.msra.mxu0 %v299
  %311 = vmatprep.subr.mxu0 0.0
  %312 = vmatpush1.msra.mxu0 %v300
  %313 = vmatprep.subr.mxu0 0.0
  %314 = vmatpush1.msra.mxu0 %v301
  %315 = vmatprep.subr.mxu0 0.0
  %316 = vmatpush1.msra.mxu0 %v302
  %317 = vmatprep.subr.mxu0 0.0
  %318 = vmatpush1.msra.mxu0 %v303
  %319 = vmatprep.subr.mxu0 0.0
  %320 = vmatpush1.msra.mxu0 %v304
  %321 = vmatprep.subr.mxu0 0.0
  %322 = vmatpush1.msra.mxu0 %v305
  %323 = vmatprep.subr.mxu0 0.0
  %324 = vmatpush1.msra.mxu0 %v306
  %325 = vmatprep.subr.mxu0 0.0
  %326 = vmatpush1.msra.mxu0 0.0
  %327 = vmatprep.subr.mxu0 0.0
  %328 = vmatpush1.msra.mxu0 0.0
  %329 = vmatprep.subr.mxu0 0.0
  %330 = vmatpush1.msra.mxu0 0.0
  %331 = vmatprep.subr.mxu0 0.0
  %332 = vmatpush1.msra.mxu0 0.0
  %333 = vmatprep.subr.mxu0 0.0
  %334 = vmatpush1.msra.mxu0 0.0
  %335 = vmatprep.subr.mxu0 0.0
  %336 = vmatpush1.msra.mxu0 0.0
  %337 = vmatprep.subr.mxu0 0.0
  %338 = vmatpush1.msra.mxu0 0.0
  %339 = vmatprep.subr.mxu0 0.0
  %340 = vmatpush1.msra.mxu0 0.0
  %341 = vmatprep.subr.mxu0 0.0
  %342 = vmatpush1.msra.mxu0 0.0
  %343 = vmatprep.subr.mxu0 0.0
  %344 = vmatpush1.msra.mxu0 0.0
  %345 = vmatprep.subr.mxu0 0.0
  %346 = vmatpush1.msra.mxu0 0.0
  %347 = vmatprep.subr.mxu0 0.0
  %348 = vmatpush1.msra.mxu0 0.0
  %349 = vmatprep.subr.mxu0 0.0
  %350 = vmatpush1.msra.mxu0 0.0
  %351 = vmatprep.subr.mxu0 0.0
  %352 = vmatpush1.msra.mxu0 0.0
  %353 = vmatprep.subr.mxu0 0.0
  %354 = vmatpush1.msra.mxu0 0.0
  %355 = vmatprep.subr.mxu0 0.0
  %356 = vmatpush1.msra.mxu0 0.0
  %357 = vmatprep.subr.mxu0 0.0
  %358 = vmatpush1.msra.mxu0 0.0
  %359 = vmatprep.subr.mxu0 0.0
  %360 = vmatpush1.msra.mxu0 0.0
  %361 = vmatprep.subr.mxu0 0.0
  %362 = vmatpush1.msra.mxu0 0.0
  %363 = vmatprep.subr.mxu0 0.0
  %364 = vmatpush1.msra.mxu0 0.0
  %365 = vmatprep.subr.mxu0 0.0
  %366 = vmatpush1.msra.mxu0 0.0
  %367 = vmatprep.subr.mxu0 0.0
  %368 = vmatpush1.msra.mxu0 0.0
  %369 = vmatprep.subr.mxu0 0.0
  %370 = vmatpush1.msra.mxu0 0.0
  %371 = vmatprep.mubr.f32.mxu0 0.0
  %372 = vmatmul.mubr.f32.gmra.mrb[0].mxu0 %v39
  %v373 = vpop.f32.mrb[0].mxu0
  %v374 = vadd.f32 %v30, %v373
  %v375 = vpop.f32.mrb[0].mxu0
  %376 = vmatprep.mubr.f32.mxu0 0.0
  %377 = vmatmul.mubr.f32.gmra.mrb[0].mxu0 %v42
  %v378 = vpop.f32.mrb[0].mxu0
  %v379 = vadd.f32 %v35, %v378
  %v380 = vpop.f32.mrb[0].mxu0
  %381 = vdwg.mxu0
  %v382 = vmax.f32 %v374, 0.0
  %v383 = vmax.f32 %v379, 0.0
  %v384 = vmax.f32 %v295, %v382
  %v385 = vmax.f32 %v296, %v383
  %v386 = vmax.f32 %v208, %v384
  %v387 = vmax.f32 %v209, %v385
  %vm388 = vcmask 15360
  %389 = vst.msk [vmem:[%s3] sm:$0xff] %vm388, %v386
  %vm390 = vcmask 11264
  %391 = vst.msk [vmem:[%s3 + $0x8] sm:$0xf] %vm390, %v387
  // Predicated region
  $region14: #{cnn_forward.6} parent=0 // pred_check
    _
  $region15: #{cnn_forward.6} parent=0 // pred_check_branch
    %393 = sbr.rel (0) target = $region17
  $region16: #{cnn_forward.6} parent=0 // pred_region
    _
  $region17: #{cnn_forward.6} parent=0 // pred_fallthru
    _
  // Predicated region
  $region18: #{cnn_forward.6} parent=0 // pred_check
    _
  $region19: #{cnn_forward.6} parent=0 // pred_check_branch
    %395 = sbr.rel (0) target = $region21
  $region20: #{cnn_forward.6} parent=0 // pred_region
    _
  $region21: #{cnn_forward.6} parent=0 // pred_fallthru
    _

// kernel: cnn_forward.7
$region0: #{cnn_forward.7}
  #allocation0 [shape = 'u32[]', space=smem, size = 0x4, offset = 0x4, fixed_abs, tag = 'smem constant byte address 0x4 - core index']
  #allocation1 [shape = 'u32[144,128]{1,0:T(1,128)}', space=vmem, size = 0x12000, scoped, tag = 'internal scratch']
  %s0 = inlined_call_operand.vmem [shape: f32[2,12], index: 0, kind: input, shape index: {}]
  %s1 = inlined_call_operand.vmem [shape: f32[12,32], index: 1, kind: input, shape index: {}]
  %s2 = inlined_call_operand.vmem [shape: f32[1,32], index: 2, kind: input, shape index: {}]
  %s3 = inlined_call_operand.vmem [shape: f32[32,32], index: 3, kind: input, shape index: {}]
  %s4 = inlined_call_operand.vmem [shape: f32[1,32], index: 4, kind: input, shape index: {}]
  %s5 = inlined_call_operand.vmem [shape: f32[32,32], index: 5, kind: input, shape index: {}]
  %s6 = inlined_call_operand.vmem [shape: f32[1,32], index: 6, kind: input, shape index: {}]
  %s7 = inlined_call_operand.vmem [shape: f32[32,32], index: 7, kind: input, shape index: {}]
  %s8 = inlined_call_operand.vmem [shape: f32[1,32], index: 8, kind: input, shape index: {}]
  %s9 = inlined_call_operand.vmem [shape: f32[32,5], index: 9, kind: input, shape index: {}]
  %s10 = inlined_call_operand.vmem [shape: f32[1,5], index: 10, kind: input, shape index: {}]
  %s11 = inlined_call_operand.hbm [shape: f32[2,5], index: 11, kind: output, shape index: {}]
  %s12 = sld [smem:[#allocation0]]
  $region54: #{cnn_forward.7} parent=0
    _
  %s14 = ssub.s32 1, %s12
  %s15 = scalar_select 0, %s14, %s12
  $region1: #{cnn_forward.7} parent=0
    #allocation2 [shape = 'u8[1024]{0}', space=vmem, size = 0x400, scoped, tag = 'output window, operand 0, single buffered']
    #allocation3 [shape = 's32[1]{0}', space=sflag, size = 0x4, scoped, tag = 'scoped memory for cnn_forward.7']
    %16 = vsyncpa [#allocation3], 0
    // Predicated region
    $region2: #{cnn_forward.7} parent=1 // pred_check
      _
    $region3: #{cnn_forward.7} parent=1 // pred_check_branch
      %18 = sbr.rel (0) target = $region5
    $region4: #{cnn_forward.7} parent=1 // pred_region
      _
    $region5: #{cnn_forward.7} parent=1 // pred_fallthru
      _
    // Predicated region
    $region6: #{cnn_forward.7} parent=1 // pred_check
      _
    $region7: #{cnn_forward.7} parent=1 // pred_check_branch
      %20 = sbr.rel (0) target = $region9
    $region8: #{cnn_forward.7} parent=1 // pred_region
      _
    $region9: #{cnn_forward.7} parent=1 // pred_fallthru
      _
    // Predicated region
    $region10: #{cnn_forward.7} parent=1 // pred_check
      _
    $region11: #{cnn_forward.7} parent=1 // pred_check_branch
      %22 = sbr.rel (0) target = $region13
    $region12: #{cnn_forward.7} parent=1 // pred_region
      _
    $region13: #{cnn_forward.7} parent=1 // pred_fallthru
      _
    // Predicated region
    $region14: #{cnn_forward.7} parent=1 // pred_check
      _
    $region15: #{cnn_forward.7} parent=1 // pred_check_branch
      %24 = sbr.rel (0) target = $region17
    $region16: #{cnn_forward.7} parent=1 // pred_region
      _
    $region17: #{cnn_forward.7} parent=1 // pred_fallthru
      _
    // Predicated region
    $region18: #{cnn_forward.7} parent=1 // pred_check
      _
    $region19: #{cnn_forward.7} parent=1 // pred_check_branch
      %26 = sbr.rel (0) target = $region21
    $region20: #{cnn_forward.7} parent=1 // pred_region
      _
    $region21: #{cnn_forward.7} parent=1 // pred_fallthru
      _
    // Predicated region
    $region22: #{cnn_forward.7} parent=1 // pred_check
      _
    $region23: #{cnn_forward.7} parent=1 // pred_check_branch
      %28 = sbr.rel (0) target = $region25
    $region24: #{cnn_forward.7} parent=1 // pred_region
      _
    $region25: #{cnn_forward.7} parent=1 // pred_fallthru
      _
    // Predicated region
    $region26: #{cnn_forward.7} parent=1 // pred_check
      _
    $region27: #{cnn_forward.7} parent=1 // pred_check_branch
      %30 = sbr.rel (0) target = $region29
    $region28: #{cnn_forward.7} parent=1 // pred_region
      _
    $region29: #{cnn_forward.7} parent=1 // pred_fallthru
      _
    // Predicated region
    $region30: #{cnn_forward.7} parent=1 // pred_check
      _
    $region31: #{cnn_forward.7} parent=1 // pred_check_branch
      %32 = sbr.rel (0) target = $region33
    $region32: #{cnn_forward.7} parent=1 // pred_region
      _
    $region33: #{cnn_forward.7} parent=1 // pred_fallthru
      _
    // Predicated region
    $region34: #{cnn_forward.7} parent=1 // pred_check
      _
    $region35: #{cnn_forward.7} parent=1 // pred_check_branch
      %34 = sbr.rel (0) target = $region37
    $region36: #{cnn_forward.7} parent=1 // pred_region
      _
    $region37: #{cnn_forward.7} parent=1 // pred_fallthru
      _
    // Predicated region
    $region38: #{cnn_forward.7} parent=1 // pred_check
      _
    $region39: #{cnn_forward.7} parent=1 // pred_check_branch
      %36 = sbr.rel (0) target = $region41
    $region40: #{cnn_forward.7} parent=1 // pred_region
      _
    $region41: #{cnn_forward.7} parent=1 // pred_fallthru
      _
    // Predicated region
    $region42: #{cnn_forward.7} parent=1 // pred_check
      _
    $region43: #{cnn_forward.7} parent=1 // pred_check_branch
      %38 = sbr.rel (0) target = $region45
    $region44: #{cnn_forward.7} parent=1 // pred_region
      _
    $region45: #{cnn_forward.7} parent=1 // pred_fallthru
      _
    %v39 = vld [vmem:[%s0] sm:$0x3]
    %v40 = vld [vmem:[%s1] sm:$0xff]
    %v41 = vld [vmem:[%s1 + $0x8] sm:$0xf]
    %v42 = vld [vmem:[%s2] sm:$0x1]
    %v44 = vlaneseq
    %v45 = vshrl.u32 %v44, 7
    %v46 = vsub.s32 0, %v45
    %v47 = vrot.slane %v42, %v46
    %vm49 = vcmask 97280
    %v51 = vsel %vm49, %v39, 0
    %vm53 = vcmask 1043456
    %v55 = vsel %vm53, %v41, 0
    %57 = vmatprep.subr.mxu0 0.0
    %58 = vmatpush1.msra.mxu0 %v40
    %59 = vmatprep.subr.mxu0 0.0
    %60 = vmatpush1.msra.mxu0 %v55
    %61 = vmatprep.subr.mxu0 0.0
    %62 = vmatpush1.msra.mxu0 0.0
    %63 = vmatprep.subr.mxu0 0.0
    %64 = vmatpush1.msra.mxu0 0.0
    %65 = vmatprep.subr.mxu0 0.0
    %66 = vmatpush1.msra.mxu0 0.0
    %67 = vmatprep.subr.mxu0 0.0
    %68 = vmatpush1.msra.mxu0 0.0
    %69 = vmatprep.subr.mxu0 0.0
    %70 = vmatpush1.msra.mxu0 0.0
    %71 = vmatprep.subr.mxu0 0.0
    %72 = vmatpush1.msra.mxu0 0.0
    %73 = vmatprep.subr.mxu0 0.0
    %74 = vmatpush1.msra.mxu0 0.0
    %75 = vmatprep.subr.mxu0 0.0
    %76 = vmatpush1.msra.mxu0 0.0
    %77 = vmatprep.subr.mxu0 0.0
    %78 = vmatpush1.msra.mxu0 0.0
    %79 = vmatprep.subr.mxu0 0.0
    %80 = vmatpush1.msra.mxu0 0.0
    %81 = vmatprep.subr.mxu0 0.0
    %82 = vmatpush1.msra.mxu0 0.0
    %83 = vmatprep.subr.mxu0 0.0
    %84 = vmatpush1.msra.mxu0 0.0
    %85 = vmatprep.subr.mxu0 0.0
    %86 = vmatpush1.msra.mxu0 0.0
    %87 = vmatprep.subr.mxu0 0.0
    %88 = vmatpush1.msra.mxu0 0.0
    %89 = vmatprep.subr.mxu0 0.0
    %90 = vmatpush1.msra.mxu0 0.0
    %91 = vmatprep.subr.mxu0 0.0
    %92 = vmatpush1.msra.mxu0 0.0
    %93 = vmatprep.subr.mxu0 0.0
    %94 = vmatpush1.msra.mxu0 0.0
    %95 = vmatprep.subr.mxu0 0.0
    %96 = vmatpush1.msra.mxu0 0.0
    %97 = vmatprep.subr.mxu0 0.0
    %98 = vmatpush1.msra.mxu0 0.0
    %99 = vmatprep.subr.mxu0 0.0
    %100 = vmatpush1.msra.mxu0 0.0
    %101 = vmatprep.subr.mxu0 0.0
    %102 = vmatpush1.msra.mxu0 0.0
    %103 = vmatprep.subr.mxu0 0.0
    %104 = vmatpush1.msra.mxu0 0.0
    %105 = vmatprep.subr.mxu0 0.0
    %106 = vmatpush1.msra.mxu0 0.0
    %107 = vmatprep.subr.mxu0 0.0
    %108 = vmatpush1.msra.mxu0 0.0
    %109 = vmatprep.subr.mxu0 0.0
    %110 = vmatpush1.msra.mxu0 0.0
    %111 = vmatprep.subr.mxu0 0.0
    %112 = vmatpush1.msra.mxu0 0.0
    %113 = vmatprep.subr.mxu0 0.0
    %114 = vmatpush1.msra.mxu0 0.0
    %115 = vmatprep.subr.mxu0 0.0
    %116 = vmatpush1.msra.mxu0 0.0
    %117 = vmatprep.subr.mxu0 0.0
    %118 = vmatpush1.msra.mxu0 0.0
    %119 = vmatprep.subr.mxu0 0.0
    %120 = vmatpush1.msra.mxu0 0.0
    %121 = vmatprep.mubr.f32.mxu0 0.0
    %122 = vmatmul.mubr.f32.gmra.mrb[0].mxu0 %v51
    %v123 = vpop.f32.mrb[0].mxu0
    %v124 = vadd.f32 %v47, %v123
    %v125 = vpop.f32.mrb[0].mxu0
    %126 = vdwg.mxu0
    %v127 = vmax.f32 %v124, 0.0
    %v128 = vld [vmem:[%s3] sm:$0xff]
    %v129 = vld [vmem:[%s3 + $0x8] sm:$0xff]
    %v130 = vld [vmem:[%s3 + $0x10] sm:$0xff]
    %v131 = vld [vmem:[%s3 + $0x18] sm:$0xff]
    %v132 = vld [vmem:[%s4] sm:$0x1]
    %v134 = vlaneseq
    %v135 = vshrl.u32 %v134, 7
    %v136 = vsub.s32 0, %v135
    %v137 = vrot.slane %v132, %v136
    %vm139 = vcmask 261120
    %v141 = vsel %vm139, %v127, 0
    %143 = vmatprep.subr.mxu0 0.0
    %144 = vmatpush1.msra.mxu0 %v128
    %145 = vmatprep.subr.mxu0 0.0
    %146 = vmatpush1.msra.mxu0 %v129
    %147 = vmatprep.subr.mxu0 0.0
    %148 = vmatpush1.msra.mxu0 %v130
    %149 = vmatprep.subr.mxu0 0.0
    %150 = vmatpush1.msra.mxu0 %v131
    %151 = vmatprep.subr.mxu0 0.0
    %152 = vmatpush1.msra.mxu0 0.0
    %153 = vmatprep.subr.mxu0 0.0
    %154 = vmatpush1.msra.mxu0 0.0
    %155 = vmatprep.subr.mxu0 0.0
    %156 = vmatpush1.msra.mxu0 0.0
    %157 = vmatprep.subr.mxu0 0.0
    %158 = vmatpush1.msra.mxu0 0.0
    %159 = vmatprep.subr.mxu0 0.0
    %160 = vmatpush1.msra.mxu0 0.0
    %161 = vmatprep.subr.mxu0 0.0
    %162 = vmatpush1.msra.mxu0 0.0
    %163 = vmatprep.subr.mxu0 0.0
    %164 = vmatpush1.msra.mxu0 0.0
    %165 = vmatprep.subr.mxu0 0.0
    %166 = vmatpush1.msra.mxu0 0.0
    %167 = vmatprep.subr.mxu0 0.0
    %168 = vmatpush1.msra.mxu0 0.0
    %169 = vmatprep.subr.mxu0 0.0
    %170 = vmatpush1.msra.mxu0 0.0
    %171 = vmatprep.subr.mxu0 0.0
    %172 = vmatpush1.msra.mxu0 0.0
    %173 = vmatprep.subr.mxu0 0.0
    %174 = vmatpush1.msra.mxu0 0.0
    %175 = vmatprep.subr.mxu0 0.0
    %176 = vmatpush1.msra.mxu0 0.0
    %177 = vmatprep.subr.mxu0 0.0
    %178 = vmatpush1.msra.mxu0 0.0
    %179 = vmatprep.subr.mxu0 0.0
    %180 = vmatpush1.msra.mxu0 0.0
    %181 = vmatprep.subr.mxu0 0.0
    %182 = vmatpush1.msra.mxu0 0.0
    %183 = vmatprep.subr.mxu0 0.0
    %184 = vmatpush1.msra.mxu0 0.0
    %185 = vmatprep.subr.mxu0 0.0
    %186 = vmatpush1.msra.mxu0 0.0
    %187 = vmatprep.subr.mxu0 0.0
    %188 = vmatpush1.msra.mxu0 0.0
    %189 = vmatprep.subr.mxu0 0.0
    %190 = vmatpush1.msra.mxu0 0.0
    %191 = vmatprep.subr.mxu0 0.0
    %192 = vmatpush1.msra.mxu0 0.0
    %193 = vmatprep.subr.mxu0 0.0
    %194 = vmatpush1.msra.mxu0 0.0
    %195 = vmatprep.subr.mxu0 0.0
    %196 = vmatpush1.msra.mxu0 0.0
    %197 = vmatprep.subr.mxu0 0.0
    %198 = vmatpush1.msra.mxu0 0.0
    %199 = vmatprep.subr.mxu0 0.0
    %200 = vmatpush1.msra.mxu0 0.0
    %201 = vmatprep.subr.mxu0 0.0
    %202 = vmatpush1.msra.mxu0 0.0
    %203 = vmatprep.subr.mxu0 0.0
    %204 = vmatpush1.msra.mxu0 0.0
    %205 = vmatprep.subr.mxu0 0.0
    %206 = vmatpush1.msra.mxu0 0.0
    %207 = vmatprep.mubr.f32.mxu0 0.0
    %208 = vmatmul.mubr.f32.gmra.mrb[0].mxu0 %v141
    %v209 = vpop.f32.mrb[0].mxu0
    %v210 = vadd.f32 %v137, %v209
    %v211 = vpop.f32.mrb[0].mxu0
    %212 = vdwg.mxu0
    %v213 = vmax.f32 %v210, 0.0
    %v214 = vld [vmem:[%s5] sm:$0xff]
    %v215 = vld [vmem:[%s5 + $0x8] sm:$0xff]
    %v216 = vld [vmem:[%s5 + $0x10] sm:$0xff]
    %v217 = vld [vmem:[%s5 + $0x18] sm:$0xff]
    %v218 = vld [vmem:[%s6] sm:$0x1]
    %v220 = vlaneseq
    %v221 = vshrl.u32 %v220, 7
    %v222 = vsub.s32 0, %v221
    %v223 = vrot.slane %v218, %v222
    %v226 = vsel %vm139, %v213, 0
    %228 = vmatprep.subr.mxu0 0.0
    %229 = vmatpush1.msra.mxu0 %v214
    %230 = vmatprep.subr.mxu0 0.0
    %231 = vmatpush1.msra.mxu0 %v215
    %232 = vmatprep.subr.mxu0 0.0
    %233 = vmatpush1.msra.mxu0 %v216
    %234 = vmatprep.subr.mxu0 0.0
    %235 = vmatpush1.msra.mxu0 %v217
    %236 = vmatprep.subr.mxu0 0.0
    %237 = vmatpush1.msra.mxu0 0.0
    %238 = vmatprep.subr.mxu0 0.0
    %239 = vmatpush1.msra.mxu0 0.0
    %240 = vmatprep.subr.mxu0 0.0
    %241 = vmatpush1.msra.mxu0 0.0
    %242 = vmatprep.subr.mxu0 0.0
    %243 = vmatpush1.msra.mxu0 0.0
    %244 = vmatprep.subr.mxu0 0.0
    %245 = vmatpush1.msra.mxu0 0.0
    %246 = vmatprep.subr.mxu0 0.0
    %247 = vmatpush1.msra.mxu0 0.0
    %248 = vmatprep.subr.mxu0 0.0
    %249 = vmatpush1.msra.mxu0 0.0
    %250 = vmatprep.subr.mxu0 0.0
    %251 = vmatpush1.msra.mxu0 0.0
    %252 = vmatprep.subr.mxu0 0.0
    %253 = vmatpush1.msra.mxu0 0.0
    %254 = vmatprep.subr.mxu0 0.0
    %255 = vmatpush1.msra.mxu0 0.0
    %256 = vmatprep.subr.mxu0 0.0
    %257 = vmatpush1.msra.mxu0 0.0
    %258 = vmatprep.subr.mxu0 0.0
    %259 = vmatpush1.msra.mxu0 0.0
    %260 = vmatprep.subr.mxu0 0.0
    %261 = vmatpush1.msra.mxu0 0.0
    %262 = vmatprep.subr.mxu0 0.0
    %263 = vmatpush1.msra.mxu0 0.0
    %264 = vmatprep.subr.mxu0 0.0
    %265 = vmatpush1.msra.mxu0 0.0
    %266 = vmatprep.subr.mxu0 0.0
    %267 = vmatpush1.msra.mxu0 0.0
    %268 = vmatprep.subr.mxu0 0.0
    %269 = vmatpush1.msra.mxu0 0.0
    %270 = vmatprep.subr.mxu0 0.0
    %271 = vmatpush1.msra.mxu0 0.0
    %272 = vmatprep.subr.mxu0 0.0
    %273 = vmatpush1.msra.mxu0 0.0
    %274 = vmatprep.subr.mxu0 0.0
    %275 = vmatpush1.msra.mxu0 0.0
    %276 = vmatprep.subr.mxu0 0.0
    %277 = vmatpush1.msra.mxu0 0.0
    %278 = vmatprep.subr.mxu0 0.0
    %279 = vmatpush1.msra.mxu0 0.0
    %280 = vmatprep.subr.mxu0 0.0
    %281 = vmatpush1.msra.mxu0 0.0
    %282 = vmatprep.subr.mxu0 0.0
    %283 = vmatpush1.msra.mxu0 0.0
    %284 = vmatprep.subr.mxu0 0.0
    %285 = vmatpush1.msra.mxu0 0.0
    %286 = vmatprep.subr.mxu0 0.0
    %287 = vmatpush1.msra.mxu0 0.0
    %288 = vmatprep.subr.mxu0 0.0
    %289 = vmatpush1.msra.mxu0 0.0
    %290 = vmatprep.subr.mxu0 0.0
    %291 = vmatpush1.msra.mxu0 0.0
    %292 = vmatprep.mubr.f32.mxu0 0.0
    %293 = vmatmul.mubr.f32.gmra.mrb[0].mxu0 %v226
    %v294 = vpop.f32.mrb[0].mxu0
    %v295 = vadd.f32 %v223, %v294
    %v296 = vpop.f32.mrb[0].mxu0
    %297 = vdwg.mxu0
    %v298 = vmax.f32 %v295, 0.0
    %v299 = vld [vmem:[%s7] sm:$0xff]
    %v300 = vld [vmem:[%s7 + $0x8] sm:$0xff]
    %v301 = vld [vmem:[%s7 + $0x10] sm:$0xff]
    %v302 = vld [vmem:[%s7 + $0x18] sm:$0xff]
    %v303 = vld [vmem:[%s8] sm:$0x1]
    %v305 = vlaneseq
    %v306 = vshrl.u32 %v305, 7
    %v307 = vsub.s32 0, %v306
    %v308 = vrot.slane %v303, %v307
    %v311 = vsel %vm139, %v298, 0
    %313 = vmatprep.subr.mxu0 0.0
    %314 = vmatpush1.msra.mxu0 %v299
    %315 = vmatprep.subr.mxu0 0.0
    %316 = vmatpush1.msra.mxu0 %v300
    %317 = vmatprep.subr.mxu0 0.0
    %318 = vmatpush1.msra.mxu0 %v301
    %319 = vmatprep.subr.mxu0 0.0
    %320 = vmatpush1.msra.mxu0 %v302
    %321 = vmatprep.subr.mxu0 0.0
    %322 = vmatpush1.msra.mxu0 0.0
    %323 = vmatprep.subr.mxu0 0.0
    %324 = vmatpush1.msra.mxu0 0.0
    %325 = vmatprep.subr.mxu0 0.0
    %326 = vmatpush1.msra.mxu0 0.0
    %327 = vmatprep.subr.mxu0 0.0
    %328 = vmatpush1.msra.mxu0 0.0
    %329 = vmatprep.subr.mxu0 0.0
    %330 = vmatpush1.msra.mxu0 0.0
    %331 = vmatprep.subr.mxu0 0.0
    %332 = vmatpush1.msra.mxu0 0.0
    %333 = vmatprep.subr.mxu0 0.0
    %334 = vmatpush1.msra.mxu0 0.0
    %335 = vmatprep.subr.mxu0 0.0
    %336 = vmatpush1.msra.mxu0 0.0
    %337 = vmatprep.subr.mxu0 0.0
    %338 = vmatpush1.msra.mxu0 0.0
    %339 = vmatprep.subr.mxu0 0.0
    %340 = vmatpush1.msra.mxu0 0.0
    %341 = vmatprep.subr.mxu0 0.0
    %342 = vmatpush1.msra.mxu0 0.0
    %343 = vmatprep.subr.mxu0 0.0
    %344 = vmatpush1.msra.mxu0 0.0
    %345 = vmatprep.subr.mxu0 0.0
    %346 = vmatpush1.msra.mxu0 0.0
    %347 = vmatprep.subr.mxu0 0.0
    %348 = vmatpush1.msra.mxu0 0.0
    %349 = vmatprep.subr.mxu0 0.0
    %350 = vmatpush1.msra.mxu0 0.0
    %351 = vmatprep.subr.mxu0 0.0
    %352 = vmatpush1.msra.mxu0 0.0
    %353 = vmatprep.subr.mxu0 0.0
    %354 = vmatpush1.msra.mxu0 0.0
    %355 = vmatprep.subr.mxu0 0.0
    %356 = vmatpush1.msra.mxu0 0.0
    %357 = vmatprep.subr.mxu0 0.0
    %358 = vmatpush1.msra.mxu0 0.0
    %359 = vmatprep.subr.mxu0 0.0
    %360 = vmatpush1.msra.mxu0 0.0
    %361 = vmatprep.subr.mxu0 0.0
    %362 = vmatpush1.msra.mxu0 0.0
    %363 = vmatprep.subr.mxu0 0.0
    %364 = vmatpush1.msra.mxu0 0.0
    %365 = vmatprep.subr.mxu0 0.0
    %366 = vmatpush1.msra.mxu0 0.0
    %367 = vmatprep.subr.mxu0 0.0
    %368 = vmatpush1.msra.mxu0 0.0
    %369 = vmatprep.subr.mxu0 0.0
    %370 = vmatpush1.msra.mxu0 0.0
    %371 = vmatprep.subr.mxu0 0.0
    %372 = vmatpush1.msra.mxu0 0.0
    %373 = vmatprep.subr.mxu0 0.0
    %374 = vmatpush1.msra.mxu0 0.0
    %375 = vmatprep.subr.mxu0 0.0
    %376 = vmatpush1.msra.mxu0 0.0
    %377 = vmatprep.mubr.f32.mxu0 0.0
    %378 = vmatmul.mubr.f32.gmra.mrb[0].mxu0 %v311
    %v379 = vpop.f32.mrb[0].mxu0
    %v380 = vadd.f32 %v308, %v379
    %v381 = vpop.f32.mrb[0].mxu0
    %382 = vdwg.mxu0
    %v383 = vmax.f32 %v380, 0.0
    %v384 = vld [vmem:[%s9] sm:$0xff]
    %v385 = vld [vmem:[%s9 + $0x8] sm:$0xff]
    %v386 = vld [vmem:[%s9 + $0x10] sm:$0xff]
    %v387 = vld [vmem:[%s9 + $0x18] sm:$0xff]
    %v388 = vld [vmem:[%s10] sm:$0x1]
    %v390 = vlaneseq
    %v391 = vshrl.u32 %v390, 7
    %v392 = vsub.s32 0, %v391
    %v393 = vrot.slane %v388, %v392
    %v396 = vsel %vm139, %v383, 0
    %398 = vmatprep.subr.mxu0 0.0
    %399 = vmatpush1.msra.mxu0 %v384
    %400 = vmatprep.subr.mxu0 0.0
    %401 = vmatpush1.msra.mxu0 %v385
    %402 = vmatprep.subr.mxu0 0.0
    %403 = vmatpush1.msra.mxu0 %v386
    %404 = vmatprep.subr.mxu0 0.0
    %405 = vmatpush1.msra.mxu0 %v387
    %406 = vmatprep.subr.mxu0 0.0
    %407 = vmatpush1.msra.mxu0 0.0
    %408 = vmatprep.subr.mxu0 0.0
    %409 = vmatpush1.msra.mxu0 0.0
    %410 = vmatprep.subr.mxu0 0.0
    %411 = vmatpush1.msra.mxu0 0.0
    %412 = vmatprep.subr.mxu0 0.0
    %413 = vmatpush1.msra.mxu0 0.0
    %414 = vmatprep.subr.mxu0 0.0
    %415 = vmatpush1.msra.mxu0 0.0
    %416 = vmatprep.subr.mxu0 0.0
    %417 = vmatpush1.msra.mxu0 0.0
    %418 = vmatprep.subr.mxu0 0.0
    %419 = vmatpush1.msra.mxu0 0.0
    %420 = vmatprep.subr.mxu0 0.0
    %421 = vmatpush1.msra.mxu0 0.0
    %422 = vmatprep.subr.mxu0 0.0
    %423 = vmatpush1.msra.mxu0 0.0
    %424 = vmatprep.subr.mxu0 0.0
    %425 = vmatpush1.msra.mxu0 0.0
    %426 = vmatprep.subr.mxu0 0.0
    %427 = vmatpush1.msra.mxu0 0.0
    %428 = vmatprep.subr.mxu0 0.0
    %429 = vmatpush1.msra.mxu0 0.0
    %430 = vmatprep.subr.mxu0 0.0
    %431 = vmatpush1.msra.mxu0 0.0
    %432 = vmatprep.subr.mxu0 0.0
    %433 = vmatpush1.msra.mxu0 0.0
    %434 = vmatprep.subr.mxu0 0.0
    %435 = vmatpush1.msra.mxu0 0.0
    %436 = vmatprep.subr.mxu0 0.0
    %437 = vmatpush1.msra.mxu0 0.0
    %438 = vmatprep.subr.mxu0 0.0
    %439 = vmatpush1.msra.mxu0 0.0
    %440 = vmatprep.subr.mxu0 0.0
    %441 = vmatpush1.msra.mxu0 0.0
    %442 = vmatprep.subr.mxu0 0.0
    %443 = vmatpush1.msra.mxu0 0.0
    %444 = vmatprep.subr.mxu0 0.0
    %445 = vmatpush1.msra.mxu0 0.0
    %446 = vmatprep.subr.mxu0 0.0
    %447 = vmatpush1.msra.mxu0 0.0
    %448 = vmatprep.subr.mxu0 0.0
    %449 = vmatpush1.msra.mxu0 0.0
    %450 = vmatprep.subr.mxu0 0.0
    %451 = vmatpush1.msra.mxu0 0.0
    %452 = vmatprep.subr.mxu0 0.0
    %453 = vmatpush1.msra.mxu0 0.0
    %454 = vmatprep.subr.mxu0 0.0
    %455 = vmatpush1.msra.mxu0 0.0
    %456 = vmatprep.subr.mxu0 0.0
    %457 = vmatpush1.msra.mxu0 0.0
    %458 = vmatprep.subr.mxu0 0.0
    %459 = vmatpush1.msra.mxu0 0.0
    %460 = vmatprep.subr.mxu0 0.0
    %461 = vmatpush1.msra.mxu0 0.0
    %462 = vmatprep.mubr.f32.mxu0 0.0
    %463 = vmatmul.mubr.f32.gmra.mrb[0].mxu0 %v396
    %v464 = vpop.f32.mrb[0].mxu0
    %v465 = vadd.f32 %v393, %v464
    %v466 = vpop.f32.mrb[0].mxu0
    %467 = vdwg.mxu0
    %vm468 = vcmask 33792
    %469 = vst.msk [vmem:[#allocation2] sm:$0x3] %vm468, %v465
    // Predicated region
    $region46: #{cnn_forward.7} parent=1 // pred_check
      _
    $region47: #{cnn_forward.7} parent=1 // pred_check_branch
      %471 = sbr.rel (0) target = $region49
    $region48: #{cnn_forward.7} parent=1 // pred_region
      %s473 = ssub.s32 32, 32
      %474 = vsyncadd [#allocation3], %s473
      %s476 = sshll.u32 [#allocation2], 4
      %s477 = int_to_ptr.vmem [resolvable:$true] %s476
      %479 = dma.vmem_to_hbm [thread:$0]  %s477, 32, %s11, [#allocation3]
    $region49: #{cnn_forward.7} parent=1 // pred_fallthru
      _
    // Predicated region
    $region50: #{cnn_forward.7} parent=1 // pred_check
      _
    $region51: #{cnn_forward.7} parent=1 // pred_check_branch
      %481 = sbr.rel (0) target = $region53
    $region52: #{cnn_forward.7} parent=1 // pred_region
      %482 = dma.done [#allocation3], 32
    $region53: #{cnn_forward.7} parent=1 // pred_fallthru
      _
    %483 = vsyncpa [#allocation3], 1

</llo_original>
